<compile_context>
chip_gen: v7x
topology: tpu7x:2x2x1
jax: 0.10.0
libtpu: 0.0.40
codegen_flags: <defaults>
</compile_context>

<pallas_src>
import jax
import jax.numpy as jnp
import numpy as np
from jax.experimental import pallas as pl
from jax.experimental.pallas import tpu as pltpu


def _round_up(v, m):
    return (v + m - 1) // m * m


def _layernorm(v, w, b, eps):
    mu = jnp.mean(v, axis=-1, keepdims=True)
    var = jnp.mean((v - mu) ** 2, axis=-1, keepdims=True)
    return (v - mu) * jax.lax.rsqrt(var + eps) * w + b


def _cropr_kernel(xhm_ref, qhm_ref, qsum_ref, kmask_ref,
                  proj_hm_ref, proj_b_ref,
                  ln1_w_ref, ln1_b_ref,
                  fc1_wt_ref, fc1_b_ref,
                  fc2_wt_ref, fc2_b_ref,
                  ln2_w_ref, ln2_b_ref,
                  head_wt_ref, head_b_ref,
                  xaggr_ref, scores_ref, pred_ref):
    x = xhm_ref[...]            # (H, Np, hd) bf16 keys == values (k/v proj = Identity)
    q = qhm_ref[...]            # (H, M, hd)  bf16 learnable queries (q proj = Identity)
    hd = q.shape[-1]
    scale = hd ** -0.5

    # raw attention logits: bf16 operands, f32 accumulation on the MXU
    attn = jnp.einsum('hmd,hnd->hmn', q, x,
                      preferred_element_type=jnp.float32)          # (H, M, Np)

    # scores[n] = sum_{h,m} attn[h,m,n] == sum_h (sum_m q_h) . k_h  (exact identity)
    # -> one tiny batched matvec instead of H cross-sublane XLU reductions.
    sc = jnp.einsum('hqd,hnd->hqn', qsum_ref[...], x,
                    preferred_element_type=jnp.float32)            # (H, 1, Np)
    scores_ref[0] = jnp.sum(sc, axis=0)                            # (1, Np): cheap slab adds

    # masked, numerically-stable softmax; division via EUP reciprocal
    a = attn * scale + kmask_ref[...][None]                        # mask padded keys
    a = a - jnp.max(a, axis=-1, keepdims=True)
    p = jnp.exp(a)
    p = p * pl.reciprocal(jnp.sum(p, axis=-1, keepdims=True), approx=True)

    # attention output, head-major; v == k (Identity v projection)
    o = jnp.einsum('hmn,hnd->hmd', p.astype(jnp.bfloat16), x,
                   preferred_element_type=jnp.float32)             # (H, M, hd)

    # output projection folded per head: x_attn = sum_h o_h @ Wp_h + b
    # (avoids any lane-axis concat of the head outputs)
    op = jnp.einsum('hmd,hdk->hmk', o.astype(jnp.bfloat16), proj_hm_ref[...],
                    preferred_element_type=jnp.float32)            # (H, M, D)
    x_attn = jnp.sum(op, axis=0) + proj_b_ref[...]                 # (M, D)

    # residual MLP block: x + fc2(GELU(fc1(LayerNorm_eps1e-6(x))))
    y = _layernorm(x_attn, ln1_w_ref[...], ln1_b_ref[...], 1e-6)
    h1 = jnp.dot(y.astype(jnp.bfloat16), fc1_wt_ref[...],
                 preferred_element_type=jnp.float32) + fc1_b_ref[...]
    h1 = jax.nn.gelu(h1, approximate=True)     # tanh GELU -> EUP (within test tol of erf)
    h2 = jnp.dot(h1.astype(jnp.bfloat16), fc2_wt_ref[...],
                 preferred_element_type=jnp.float32) + fc2_b_ref[...]
    x_aggr = x_attn + h2

    # segmentation head: Linear(LayerNorm_eps1e-5(x_aggr)); class dim lane-padded
    z = _layernorm(x_aggr, ln2_w_ref[...], ln2_b_ref[...], 1e-5)
    pred = jnp.dot(z.astype(jnp.bfloat16), head_wt_ref[...],
                   preferred_element_type=jnp.float32) + head_b_ref[...]

    xaggr_ref[0] = x_aggr
    pred_ref[0] = pred


def cropr_cross_attn_head(x, params, num_heads):
    """Runs the Pallas kernel. Returns (x_aggr [B,M,D], scores [B,N], pred [B,M,C])."""
    B, N, D = x.shape
    H = num_heads
    hd = D // H
    M = params["queries"].shape[0]
    Hh = params["fc1_w"].shape[0]
    C = params["head_w"].shape[0]

    f32, bf16 = jnp.float32, jnp.bfloat16

    # lane-dense padding of token / class axes (padding masked or zero, sliced after)
    Np = _round_up(max(N, 128), 128)
    Cp = _round_up(max(C, 128), 128)

    # head-major key/value layout, bf16 matmul operands
    x_p = jnp.pad(x, ((0, 0), (0, Np - N), (0, 0)))
    x_hm = x_p.reshape(B, Np, H, hd).transpose(0, 2, 1, 3).astype(bf16)      # (B,H,Np,hd)

    q = params["queries"].astype(f32)                                        # (M, D)
    q_hm = q.reshape(M, H, hd).transpose(1, 0, 2).astype(bf16)               # (H, M, hd)
    q_sum = q.sum(axis=0).reshape(H, 1, hd).astype(bf16)                     # (H, 1, hd)

    # additive key mask: 0 for real tokens, -1e30 for padded ones
    kmask = jnp.where(jnp.arange(Np) < N, 0.0, -1e30).astype(f32).reshape(1, Np)

    proj_hm = params["proj_w"].T.reshape(H, hd, D).astype(bf16)              # (H, hd, D)
    fc1_wt = params["fc1_w"].T.astype(bf16)                                  # (D, Hh)
    fc2_wt = params["fc2_w"].T.astype(bf16)                                  # (Hh, D)
    head_wt = jnp.pad(params["head_w"].T, ((0, 0), (0, Cp - C))).astype(bf16)  # (D, Cp)
    head_b = jnp.pad(params["head_b"], (0, Cp - C)).reshape(1, Cp).astype(f32)

    args = (
        x_hm, q_hm, q_sum, kmask,
        proj_hm, params["proj_b"].reshape(1, D).astype(f32),
        params["ln1_w"].reshape(1, D).astype(f32),
        params["ln1_b"].reshape(1, D).astype(f32),
        fc1_wt, params["fc1_b"].reshape(1, Hh).astype(f32),
        fc2_wt, params["fc2_b"].reshape(1, D).astype(f32),
        params["ln2_w"].reshape(1, D).astype(f32),
        params["ln2_b"].reshape(1, D).astype(f32),
        head_wt, head_b,
    )

    in_specs = [
        pl.BlockSpec((None, H, Np, hd), lambda b: (b, 0, 0, 0)),   # x (per-batch tile)
        pl.BlockSpec((H, M, hd), lambda b: (0, 0, 0)),             # queries (head-major)
        pl.BlockSpec((H, 1, hd), lambda b: (0, 0, 0)),             # sum_m queries
        pl.BlockSpec((1, Np), lambda b: (0, 0)),                   # key mask
        pl.BlockSpec((H, hd, D), lambda b: (0, 0, 0)),             # proj_w (head-major)
        pl.BlockSpec((1, D), lambda b: (0, 0)),                    # proj_b
        pl.BlockSpec((1, D), lambda b: (0, 0)),                    # ln1_w
        pl.BlockSpec((1, D), lambda b: (0, 0)),                    # ln1_b
        pl.BlockSpec((D, Hh), lambda b: (0, 0)),                   # fc1_w^T
        pl.BlockSpec((1, Hh), lambda b: (0, 0)),                   # fc1_b
        pl.BlockSpec((Hh, D), lambda b: (0, 0)),                   # fc2_w^T
        pl.BlockSpec((1, D), lambda b: (0, 0)),                    # fc2_b
        pl.BlockSpec((1, D), lambda b: (0, 0)),                    # ln2_w
        pl.BlockSpec((1, D), lambda b: (0, 0)),                    # ln2_b
        pl.BlockSpec((D, Cp), lambda b: (0, 0)),                   # head_w^T (lane-padded)
        pl.BlockSpec((1, Cp), lambda b: (0, 0)),                   # head_b  (lane-padded)
    ]
    out_specs = [
        pl.BlockSpec((1, M, D), lambda b: (b, 0, 0)),              # x_aggr
        pl.BlockSpec((1, 1, Np), lambda b: (b, 0, 0)),             # scores (lane-dense)
        pl.BlockSpec((1, M, Cp), lambda b: (b, 0, 0)),             # pred   (lane-dense)
    ]
    out_shape = (
        jax.ShapeDtypeStruct((B, M, D), f32),
        jax.ShapeDtypeStruct((B, 1, Np), f32),
        jax.ShapeDtypeStruct((B, M, Cp), f32),
    )

    # explicit VMEM budget: 2x (double-buffered) blocks + headroom for intermediates
    def blk_bytes(shape, dtype):
        s = [d for d in shape if d is not None]
        s[-1] = _round_up(s[-1], 128)
        if len(s) >= 2:
            s[-2] = _round_up(s[-2], 8)
        return int(np.prod(s)) * jnp.dtype(dtype).itemsize

    total = sum(blk_bytes(spec.block_shape, a.dtype)
                for spec, a in zip(in_specs, args))
    total += blk_bytes((1, M, D), f32) + blk_bytes((1, 1, Np), f32) + blk_bytes((1, M, Cp), f32)
    vmem_limit = int(min(2 * total + (16 << 20), 56 << 20))

    x_aggr, scores, pred = pl.pallas_call(
        _cropr_kernel,
        grid_spec=pltpu.PrefetchScalarGridSpec(
            num_scalar_prefetch=0,
            grid=(B,),
            in_specs=in_specs,
            out_specs=out_specs,
        ),
        out_shape=out_shape,
        compiler_params=pltpu.CompilerParams(
            dimension_semantics=("parallel",),
            vmem_limit_bytes=vmem_limit),
    )(*args)

    return x_aggr, scores.reshape(B, Np)[:, :N], pred[:, :, :C]


def cropr_forward(x, pos, idx, params, num_heads, pruning_rate):
    """Full Cropr.forward(x, pos, idx, inference=False)."""
    x_aggr, scores, pred = cropr_cross_attn_head(x, params, num_heads)

    # scores[:, 0] = inf  (always keep the cls token)
    scores = scores.at[:, 0].set(jnp.inf)

    # TODO(synk): argsort-based token pruning has no clean Pallas primitive;
    # it is data-dependent glue, done in plain JAX (jnp.argsort + take_along_axis).
    B, N, D = x.shape
    num_keep = N - pruning_rate
    idx_sorted = jnp.argsort(scores, axis=1, descending=True)

    x_reorder = jnp.take_along_axis(x, idx_sorted[:, :, None], axis=1)
    pos_reorder = jnp.take_along_axis(
        pos, (idx_sorted[:, 1:] - 1)[:, :, None], axis=1)
    idx_reorder = jnp.take_along_axis(idx, idx_sorted, axis=1)

    x_keep = x_reorder[:, :num_keep]
    x_r = x_reorder[:, num_keep:]
    pos_keep = pos_reorder[:, :num_keep - 1]
    pos_r = pos_reorder[:, num_keep - 1:]
    idx_keep = idx_reorder[:, :num_keep]
    idx_r = idx_reorder[:, num_keep:]
    return x_keep, x_r, pos_keep, pos_r, idx_keep, idx_r, pred


def reference_cross_attn(x, params, num_heads):
    """Pure-JAX f32 reference of CrossAttention.forward + SegmentationHead."""
    B, N, D = x.shape
    M = params["queries"].shape[0]
    hd = D // num_heads
    q = jnp.broadcast_to(params["queries"][None], (B, M, D))
    qh = q.reshape(B, M, num_heads, hd).transpose(0, 2, 1, 3)
    kh = x.reshape(B, N, num_heads, hd).transpose(0, 2, 1, 3)
    attn = jnp.einsum("bhmd,bhnd->bhmn", qh, kh)
    scores = attn.sum((1, 2))
    p = jax.nn.softmax(attn * hd ** -0.5, axis=-1)
    o = jnp.einsum("bhmn,bhnd->bhmd", p, kh)
    o = o.transpose(0, 2, 1, 3).reshape(B, M, D)
    x_attn = o @ params["proj_w"].T + params["proj_b"]

    def ln(v, w, b, eps):
        mu = v.mean(-1, keepdims=True)
        var = ((v - mu) ** 2).mean(-1, keepdims=True)
        return (v - mu) / jnp.sqrt(var + eps) * w + b

    y = ln(x_attn, params["ln1_w"], params["ln1_b"], 1e-6)
    h = jax.nn.gelu(y @ params["fc1_w"].T + params["fc1_b"], approximate=False)
    x_aggr = x_attn + (h @ params["fc2_w"].T + params["fc2_b"])
    z = ln(x_aggr, params["ln2_w"], params["ln2_b"], 1e-5)
    pred = z @ params["head_w"].T + params["head_b"]
    return x_aggr, scores, pred


if __name__ == "__main__":
    # small shapes consistent with the module (embed_dim % num_heads == 0)
    B, N, D = 2, 80, 64
    num_heads = 4
    M = 16                # num_queries
    C = 48                # num_classes
    mlp_ratio = 4.0
    pruning_rate = 16
    Hh = int(D * mlp_ratio)

    key = jax.random.PRNGKey(0)
    keys = jax.random.split(key, 8)

    # deterministic synthetic parameters (module __init__ shapes)
    params = {
        "queries": jax.random.normal(keys[0], (M, D), jnp.float32) * D ** -0.5,
        "proj_w": jax.random.normal(keys[1], (D, D), jnp.float32) * 0.02,
        "proj_b": jnp.zeros((D,), jnp.float32),
        "ln1_w": jnp.ones((D,), jnp.float32),
        "ln1_b": jnp.zeros((D,), jnp.float32),
        "fc1_w": jax.random.normal(keys[2], (Hh, D), jnp.float32) * 0.02,
        "fc1_b": jnp.zeros((Hh,), jnp.float32),
        "fc2_w": jax.random.normal(keys[3], (D, Hh), jnp.float32) * 0.02,
        "fc2_b": jnp.zeros((D,), jnp.float32),
        "ln2_w": jnp.ones((D,), jnp.float32),
        "ln2_b": jnp.zeros((D,), jnp.float32),
        "head_w": jax.random.normal(keys[4], (C, D), jnp.float32) * 0.02,
        "head_b": jnp.zeros((C,), jnp.float32),
    }

    x = jax.random.normal(keys[5], (B, N, D), jnp.float32)
    pos = jax.random.normal(keys[6], (B, N - 1, D), jnp.float32)
    idx = jnp.broadcast_to(jnp.arange(N, dtype=jnp.int32)[None, :], (B, N))

    outs = cropr_forward(x, pos, idx, params, num_heads, pruning_rate)
    outs = jax.block_until_ready(outs)

    # sanity check: bf16-MXU kernel vs. pure-JAX f32 reference
    x_aggr_k, scores_k, pred_k = cropr_cross_attn_head(x, params, num_heads)
    x_aggr_r, scores_r, pred_r = reference_cross_attn(x, params, num_heads)
    np.testing.assert_allclose(np.asarray(x_aggr_k), np.asarray(x_aggr_r),
                               rtol=2e-2, atol=2e-2)
    np.testing.assert_allclose(np.asarray(scores_k), np.asarray(scores_r),
                               rtol=2e-2, atol=4e-2)
    np.testing.assert_allclose(np.asarray(pred_k), np.asarray(pred_r),
                               rtol=2e-2, atol=2e-2)

    print("KERNEL_OK")
</pallas_src>

<mosaic_0001>
module attributes {stable_mosaic.version = 11 : i64} {
  func.func @_cropr_kernel(%arg0: i32, %arg1: memref<1x4x128x16xbf16, #tpu.memory_space<vmem>>, %arg2: memref<4x16x16xbf16, #tpu.memory_space<vmem>>, %arg3: memref<4x1x16xbf16, #tpu.memory_space<vmem>>, %arg4: memref<1x128xf32, #tpu.memory_space<vmem>>, %arg5: memref<4x16x64xbf16, #tpu.memory_space<vmem>>, %arg6: memref<1x64xf32, #tpu.memory_space<vmem>>, %arg7: memref<1x64xf32, #tpu.memory_space<vmem>>, %arg8: memref<1x64xf32, #tpu.memory_space<vmem>>, %arg9: memref<64x256xbf16, #tpu.memory_space<vmem>>, %arg10: memref<1x256xf32, #tpu.memory_space<vmem>>, %arg11: memref<256x64xbf16, #tpu.memory_space<vmem>>, %arg12: memref<1x64xf32, #tpu.memory_space<vmem>>, %arg13: memref<1x64xf32, #tpu.memory_space<vmem>>, %arg14: memref<1x64xf32, #tpu.memory_space<vmem>>, %arg15: memref<64x128xbf16, #tpu.memory_space<vmem>>, %arg16: memref<1x128xf32, #tpu.memory_space<vmem>>, %arg17: memref<1x16x64xf32, #tpu.memory_space<vmem>>, %arg18: memref<1x1x128xf32, #tpu.memory_space<vmem>>, %arg19: memref<1x16x128xf32, #tpu.memory_space<vmem>>) attributes {dimension_semantics = [#tpu.dimension_semantics<parallel>], iteration_bounds = array<i64: 2>, scalar_prefetch = 0 : i64, scratch_operands = 0 : i64, tpu.core_type = #tpu.core_type<tc>, window_params = [{transform_indices = @transform_0, window_bounds = array<i64: 1, 4, 128, 16>}, {pipeline_mode = #tpu.pipeline_mode<synchronous>, transform_indices = @transform_1, window_bounds = array<i64: 4, 16, 16>}, {pipeline_mode = #tpu.pipeline_mode<synchronous>, transform_indices = @transform_2, window_bounds = array<i64: 4, 1, 16>}, {pipeline_mode = #tpu.pipeline_mode<synchronous>, transform_indices = @transform_3, window_bounds = array<i64: 1, 128>}, {pipeline_mode = #tpu.pipeline_mode<synchronous>, transform_indices = @transform_4, window_bounds = array<i64: 4, 16, 64>}, {pipeline_mode = #tpu.pipeline_mode<synchronous>, transform_indices = @transform_5, window_bounds = array<i64: 1, 64>}, {pipeline_mode = #tpu.pipeline_mode<synchronous>, transform_indices = @transform_6, window_bounds = array<i64: 1, 64>}, {pipeline_mode = #tpu.pipeline_mode<synchronous>, transform_indices = @transform_7, window_bounds = array<i64: 1, 64>}, {pipeline_mode = #tpu.pipeline_mode<synchronous>, transform_indices = @transform_8, window_bounds = array<i64: 64, 256>}, {pipeline_mode = #tpu.pipeline_mode<synchronous>, transform_indices = @transform_9, window_bounds = array<i64: 1, 256>}, {pipeline_mode = #tpu.pipeline_mode<synchronous>, transform_indices = @transform_10, window_bounds = array<i64: 256, 64>}, {pipeline_mode = #tpu.pipeline_mode<synchronous>, transform_indices = @transform_11, window_bounds = array<i64: 1, 64>}, {pipeline_mode = #tpu.pipeline_mode<synchronous>, transform_indices = @transform_12, window_bounds = array<i64: 1, 64>}, {pipeline_mode = #tpu.pipeline_mode<synchronous>, transform_indices = @transform_13, window_bounds = array<i64: 1, 64>}, {pipeline_mode = #tpu.pipeline_mode<synchronous>, transform_indices = @transform_14, window_bounds = array<i64: 64, 128>}, {pipeline_mode = #tpu.pipeline_mode<synchronous>, transform_indices = @transform_15, window_bounds = array<i64: 1, 128>}, {transform_indices = @transform_16, window_bounds = array<i64: 1, 16, 64>}, {transform_indices = @transform_17, window_bounds = array<i64: 1, 1, 128>}, {transform_indices = @transform_18, window_bounds = array<i64: 1, 16, 128>}]} {
    %c0 = arith.constant 0 : index
    %c0_0 = arith.constant 0 : index
    %c0_1 = arith.constant 0 : index
    %c0_2 = arith.constant 0 : index
    %0 = vector.load %arg1[%c0, %c0_0, %c0_1, %c0_2] : memref<1x4x128x16xbf16, #tpu.memory_space<vmem>>, vector<1x4x128x16xbf16>
    %1 = vector.shape_cast %0 : vector<1x4x128x16xbf16> to vector<4x128x16xbf16>
    %c0_3 = arith.constant 0 : index
    %c0_4 = arith.constant 0 : index
    %c0_5 = arith.constant 0 : index
    %2 = vector.load %arg2[%c0_3, %c0_4, %c0_5] : memref<4x16x16xbf16, #tpu.memory_space<vmem>>, vector<4x16x16xbf16>
    "tpu.trace_start"() <{level = 10 : i32, message = "hmd,hnd->hmn"}> : () -> ()
    %cst = arith.constant dense<0.000000e+00> : vector<4x16x128xf32>
    %3 = tpu.matmul %2, %1, %cst {dimension_numbers = #tpu.dot_dimension_numbers<[2], [2], [1], [1], [0, 0, 0, 1, 1, 1], [0], [0]>} : vector<4x16x16xbf16>, vector<4x128x16xbf16>, vector<4x16x128xf32> -> vector<4x16x128xf32>
    "tpu.trace_stop"() : () -> ()
    %c0_6 = arith.constant 0 : index
    %c0_7 = arith.constant 0 : index
    %c0_8 = arith.constant 0 : index
    %4 = vector.load %arg3[%c0_6, %c0_7, %c0_8] : memref<4x1x16xbf16, #tpu.memory_space<vmem>>, vector<4x1x16xbf16>
    "tpu.trace_start"() <{level = 10 : i32, message = "hqd,hnd->hqn"}> : () -> ()
    %cst_9 = arith.constant dense<0.000000e+00> : vector<4x1x128xf32>
    %5 = tpu.matmul %4, %1, %cst_9 {dimension_numbers = #tpu.dot_dimension_numbers<[2], [2], [1], [1], [0, 0, 0, 1, 1, 1], [0], [0]>} : vector<4x1x16xbf16>, vector<4x128x16xbf16>, vector<4x1x128xf32> -> vector<4x1x128xf32>
    "tpu.trace_stop"() : () -> ()
    %cst_10 = arith.constant dense<0.000000e+00> : vector<1x128xf32>
    %6 = vector.multi_reduction <add>, %5, %cst_10 [0] : vector<4x1x128xf32> to vector<1x128xf32>
    %c0_11 = arith.constant 0 : index
    %c0_12 = arith.constant 0 : index
    %c0_13 = arith.constant 0 : index
    %7 = vector.load %arg18[%c0_11, %c0_12, %c0_13] : memref<1x1x128xf32, #tpu.memory_space<vmem>>, vector<1x1x128xf32>
    %8 = vector.shape_cast %7 : vector<1x1x128xf32> to vector<1x128xf32>
    %9 = vector.shape_cast %6 : vector<1x128xf32> to vector<1x1x128xf32>
    tpu.vector_store %arg18[%c0_11, %c0_12, %c0_13], %9 {strides = array<i32>} : memref<1x1x128xf32, #tpu.memory_space<vmem>>, vector<1x1x128xf32>,
    %cst_14 = arith.constant 2.500000e-01 : f32
    %10 = vector.broadcast %cst_14 : f32 to vector<4x16x128xf32>
    %11 = arith.mulf %3, %10 : vector<4x16x128xf32>
    %c0_15 = arith.constant 0 : index
    %c0_16 = arith.constant 0 : index
    %12 = vector.load %arg4[%c0_15, %c0_16] : memref<1x128xf32, #tpu.memory_space<vmem>>, vector<1x128xf32>
    %13 = vector.shape_cast %12 : vector<1x128xf32> to vector<1x1x128xf32>
    %14 = vector.broadcast %13 : vector<1x1x128xf32> to vector<4x16x128xf32>
    %15 = arith.addf %11, %14 : vector<4x16x128xf32>
    %cst_17 = arith.constant dense<0xFF800000> : vector<4x16xf32>
    %16 = vector.multi_reduction <maximumf>, %15, %cst_17 [2] : vector<4x16x128xf32> to vector<4x16xf32>
    %17 = vector.shape_cast %16 : vector<4x16xf32> to vector<4x16x1xf32>
    %18 = vector.broadcast %17 : vector<4x16x1xf32> to vector<4x16x128xf32>
    %19 = arith.subf %15, %18 : vector<4x16x128xf32>
    %20 = math.exp %19 : vector<4x16x128xf32>
    %cst_18 = arith.constant dense<0.000000e+00> : vector<4x16xf32>
    %21 = vector.multi_reduction <add>, %20, %cst_18 [2] : vector<4x16x128xf32> to vector<4x16xf32>
    %22 = vector.shape_cast %21 : vector<4x16xf32> to vector<4x16x1xf32>
    %23 = tpu.reciprocal %22 {approx = true} : vector<4x16x1xf32> -> vector<4x16x1xf32>
    %24 = vector.broadcast %23 : vector<4x16x1xf32> to vector<4x16x128xf32>
    %25 = arith.mulf %20, %24 : vector<4x16x128xf32>
    %26 = arith.truncf %25 : vector<4x16x128xf32> to vector<4x16x128xbf16>
    "tpu.trace_start"() <{level = 10 : i32, message = "hmn,hnd->hmd"}> : () -> ()
    %cst_19 = arith.constant dense<0.000000e+00> : vector<4x16x16xf32>
    %27 = tpu.matmul %26, %1, %cst_19 {dimension_numbers = #tpu.dot_dimension_numbers<[2], [1], [1], [2], [0, 0, 0, 1, 1, 2], [0], [0]>} : vector<4x16x128xbf16>, vector<4x128x16xbf16>, vector<4x16x16xf32> -> vector<4x16x16xf32>
    "tpu.trace_stop"() : () -> ()
    %28 = arith.truncf %27 : vector<4x16x16xf32> to vector<4x16x16xbf16>
    %c0_20 = arith.constant 0 : index
    %c0_21 = arith.constant 0 : index
    %c0_22 = arith.constant 0 : index
    %29 = vector.load %arg5[%c0_20, %c0_21, %c0_22] : memref<4x16x64xbf16, #tpu.memory_space<vmem>>, vector<4x16x64xbf16>
    "tpu.trace_start"() <{level = 10 : i32, message = "hmd,hdk->hmk"}> : () -> ()
    %cst_23 = arith.constant dense<0.000000e+00> : vector<4x16x64xf32>
    %30 = tpu.matmul %28, %29, %cst_23 {dimension_numbers = #tpu.dot_dimension_numbers<[2], [1], [1], [2], [0, 0, 0, 1, 1, 2], [0], [0]>} : vector<4x16x16xbf16>, vector<4x16x64xbf16>, vector<4x16x64xf32> -> vector<4x16x64xf32>
    "tpu.trace_stop"() : () -> ()
    %cst_24 = arith.constant dense<0.000000e+00> : vector<16x64xf32>
    %31 = vector.multi_reduction <add>, %30, %cst_24 [0] : vector<4x16x64xf32> to vector<16x64xf32>
    %c0_25 = arith.constant 0 : index
    %c0_26 = arith.constant 0 : index
    %32 = vector.load %arg6[%c0_25, %c0_26] : memref<1x64xf32, #tpu.memory_space<vmem>>, vector<1x64xf32>
    %33 = vector.broadcast %32 : vector<1x64xf32> to vector<16x64xf32>
    %34 = arith.addf %31, %33 : vector<16x64xf32>
    %c0_27 = arith.constant 0 : index
    %c0_28 = arith.constant 0 : index
    %35 = vector.load %arg7[%c0_27, %c0_28] : memref<1x64xf32, #tpu.memory_space<vmem>>, vector<1x64xf32>
    %c0_29 = arith.constant 0 : index
    %c0_30 = arith.constant 0 : index
    %36 = vector.load %arg8[%c0_29, %c0_30] : memref<1x64xf32, #tpu.memory_space<vmem>>, vector<1x64xf32>
    %cst_31 = arith.constant dense<0.000000e+00> : vector<16xf32>
    %37 = vector.multi_reduction <add>, %34, %cst_31 [1] : vector<16x64xf32> to vector<16xf32>
    %38 = vector.shape_cast %37 : vector<16xf32> to vector<16x1xf32>
    %cst_32 = arith.constant 6.400000e+01 : f32
    %39 = vector.broadcast %cst_32 : f32 to vector<16x1xf32>
    %40 = arith.divf %38, %39 : vector<16x1xf32>
    %41 = vector.broadcast %40 : vector<16x1xf32> to vector<16x64xf32>
    %42 = arith.subf %34, %41 : vector<16x64xf32>
    %43 = arith.mulf %42, %42 : vector<16x64xf32>
    %cst_33 = arith.constant dense<0.000000e+00> : vector<16xf32>
    %44 = vector.multi_reduction <add>, %43, %cst_33 [1] : vector<16x64xf32> to vector<16xf32>
    %45 = vector.shape_cast %44 : vector<16xf32> to vector<16x1xf32>
    %cst_34 = arith.constant 6.400000e+01 : f32
    %46 = vector.broadcast %cst_34 : f32 to vector<16x1xf32>
    %47 = arith.divf %45, %46 : vector<16x1xf32>
    %48 = vector.broadcast %40 : vector<16x1xf32> to vector<16x64xf32>
    %49 = arith.subf %34, %48 : vector<16x64xf32>
    %cst_35 = arith.constant 9.99999997E-7 : f32
    %50 = vector.broadcast %cst_35 : f32 to vector<16x1xf32>
    %51 = arith.addf %47, %50 : vector<16x1xf32>
    %52 = math.rsqrt %51 : vector<16x1xf32>
    %53 = vector.broadcast %52 : vector<16x1xf32> to vector<16x64xf32>
    %54 = arith.mulf %49, %53 : vector<16x64xf32>
    %55 = vector.broadcast %35 : vector<1x64xf32> to vector<16x64xf32>
    %56 = arith.mulf %54, %55 : vector<16x64xf32>
    %57 = vector.broadcast %36 : vector<1x64xf32> to vector<16x64xf32>
    %58 = arith.addf %56, %57 : vector<16x64xf32>
    %59 = arith.truncf %58 : vector<16x64xf32> to vector<16x64xbf16>
    %c0_36 = arith.constant 0 : index
    %c0_37 = arith.constant 0 : index
    %60 = vector.load %arg9[%c0_36, %c0_37] : memref<64x256xbf16, #tpu.memory_space<vmem>>, vector<64x256xbf16>
    %cst_38 = arith.constant dense<0.000000e+00> : vector<16x256xf32>
    %61 = tpu.matmul %59, %60, %cst_38 {dimension_numbers = #tpu.dot_dimension_numbers<[1], [0], [0], [1], [0, 0, 1, 1], [], []>} : vector<16x64xbf16>, vector<64x256xbf16>, vector<16x256xf32> -> vector<16x256xf32>
    %c0_39 = arith.constant 0 : index
    %c0_40 = arith.constant 0 : index
    %62 = vector.load %arg10[%c0_39, %c0_40] : memref<1x256xf32, #tpu.memory_space<vmem>>, vector<1x256xf32>
    %63 = vector.broadcast %62 : vector<1x256xf32> to vector<16x256xf32>
    %64 = arith.addf %61, %63 : vector<16x256xf32>
    %65 = arith.mulf %64, %64 : vector<16x256xf32>
    %66 = arith.mulf %64, %65 : vector<16x256xf32>
    %cst_41 = arith.constant 4.471500e-02 : f32
    %67 = vector.broadcast %cst_41 : f32 to vector<16x256xf32>
    %68 = arith.mulf %67, %66 : vector<16x256xf32>
    %69 = arith.addf %64, %68 : vector<16x256xf32>
    %cst_42 = arith.constant 0.797884583 : f32
    %70 = vector.broadcast %cst_42 : f32 to vector<16x256xf32>
    %71 = arith.mulf %70, %69 : vector<16x256xf32>
    %72 = math.tanh %71 : vector<16x256xf32>
    %cst_43 = arith.constant 1.000000e+00 : f32
    %73 = vector.broadcast %cst_43 : f32 to vector<16x256xf32>
    %74 = arith.addf %73, %72 : vector<16x256xf32>
    %cst_44 = arith.constant 5.000000e-01 : f32
    %75 = vector.broadcast %cst_44 : f32 to vector<16x256xf32>
    %76 = arith.mulf %75, %74 : vector<16x256xf32>
    %77 = arith.mulf %64, %76 : vector<16x256xf32>
    %78 = arith.truncf %77 : vector<16x256xf32> to vector<16x256xbf16>
    %c0_45 = arith.constant 0 : index
    %c0_46 = arith.constant 0 : index
    %79 = vector.load %arg11[%c0_45, %c0_46] : memref<256x64xbf16, #tpu.memory_space<vmem>>, vector<256x64xbf16>
    %cst_47 = arith.constant dense<0.000000e+00> : vector<16x64xf32>
    %80 = tpu.matmul %78, %79, %cst_47 {dimension_numbers = #tpu.dot_dimension_numbers<[1], [0], [0], [1], [0, 0, 1, 1], [], []>} : vector<16x256xbf16>, vector<256x64xbf16>, vector<16x64xf32> -> vector<16x64xf32>
    %c0_48 = arith.constant 0 : index
    %c0_49 = arith.constant 0 : index
    %81 = vector.load %arg12[%c0_48, %c0_49] : memref<1x64xf32, #tpu.memory_space<vmem>>, vector<1x64xf32>
    %82 = vector.broadcast %81 : vector<1x64xf32> to vector<16x64xf32>
    %83 = arith.addf %80, %82 : vector<16x64xf32>
    %84 = arith.addf %34, %83 : vector<16x64xf32>
    %c0_50 = arith.constant 0 : index
    %c0_51 = arith.constant 0 : index
    %85 = vector.load %arg13[%c0_50, %c0_51] : memref<1x64xf32, #tpu.memory_space<vmem>>, vector<1x64xf32>
    %c0_52 = arith.constant 0 : index
    %c0_53 = arith.constant 0 : index
    %86 = vector.load %arg14[%c0_52, %c0_53] : memref<1x64xf32, #tpu.memory_space<vmem>>, vector<1x64xf32>
    %cst_54 = arith.constant dense<0.000000e+00> : vector<16xf32>
    %87 = vector.multi_reduction <add>, %84, %cst_54 [1] : vector<16x64xf32> to vector<16xf32>
    %88 = vector.shape_cast %87 : vector<16xf32> to vector<16x1xf32>
    %cst_55 = arith.constant 6.400000e+01 : f32
    %89 = vector.broadcast %cst_55 : f32 to vector<16x1xf32>
    %90 = arith.divf %88, %89 : vector<16x1xf32>
    %91 = vector.broadcast %90 : vector<16x1xf32> to vector<16x64xf32>
    %92 = arith.subf %84, %91 : vector<16x64xf32>
    %93 = arith.mulf %92, %92 : vector<16x64xf32>
    %cst_56 = arith.constant dense<0.000000e+00> : vector<16xf32>
    %94 = vector.multi_reduction <add>, %93, %cst_56 [1] : vector<16x64xf32> to vector<16xf32>
    %95 = vector.shape_cast %94 : vector<16xf32> to vector<16x1xf32>
    %cst_57 = arith.constant 6.400000e+01 : f32
    %96 = vector.broadcast %cst_57 : f32 to vector<16x1xf32>
    %97 = arith.divf %95, %96 : vector<16x1xf32>
    %98 = vector.broadcast %90 : vector<16x1xf32> to vector<16x64xf32>
    %99 = arith.subf %84, %98 : vector<16x64xf32>
    %cst_58 = arith.constant 9.99999974E-6 : f32
    %100 = vector.broadcast %cst_58 : f32 to vector<16x1xf32>
    %101 = arith.addf %97, %100 : vector<16x1xf32>
    %102 = math.rsqrt %101 : vector<16x1xf32>
    %103 = vector.broadcast %102 : vector<16x1xf32> to vector<16x64xf32>
    %104 = arith.mulf %99, %103 : vector<16x64xf32>
    %105 = vector.broadcast %85 : vector<1x64xf32> to vector<16x64xf32>
    %106 = arith.mulf %104, %105 : vector<16x64xf32>
    %107 = vector.broadcast %86 : vector<1x64xf32> to vector<16x64xf32>
    %108 = arith.addf %106, %107 : vector<16x64xf32>
    %109 = arith.truncf %108 : vector<16x64xf32> to vector<16x64xbf16>
    %c0_59 = arith.constant 0 : index
    %c0_60 = arith.constant 0 : index
    %110 = vector.load %arg15[%c0_59, %c0_60] : memref<64x128xbf16, #tpu.memory_space<vmem>>, vector<64x128xbf16>
    %cst_61 = arith.constant dense<0.000000e+00> : vector<16x128xf32>
    %111 = tpu.matmul %109, %110, %cst_61 {dimension_numbers = #tpu.dot_dimension_numbers<[1], [0], [0], [1], [0, 0, 1, 1], [], []>} : vector<16x64xbf16>, vector<64x128xbf16>, vector<16x128xf32> -> vector<16x128xf32>
    %c0_62 = arith.constant 0 : index
    %c0_63 = arith.constant 0 : index
    %112 = vector.load %arg16[%c0_62, %c0_63] : memref<1x128xf32, #tpu.memory_space<vmem>>, vector<1x128xf32>
    %113 = vector.broadcast %112 : vector<1x128xf32> to vector<16x128xf32>
    %114 = arith.addf %111, %113 : vector<16x128xf32>
    %c0_64 = arith.constant 0 : index
    %c0_65 = arith.constant 0 : index
    %c0_66 = arith.constant 0 : index
    %115 = vector.load %arg17[%c0_64, %c0_65, %c0_66] : memref<1x16x64xf32, #tpu.memory_space<vmem>>, vector<1x16x64xf32>
    %116 = vector.shape_cast %115 : vector<1x16x64xf32> to vector<16x64xf32>
    %117 = vector.shape_cast %84 : vector<16x64xf32> to vector<1x16x64xf32>
    tpu.vector_store %arg17[%c0_64, %c0_65, %c0_66], %117 {strides = array<i32>} : memref<1x16x64xf32, #tpu.memory_space<vmem>>, vector<1x16x64xf32>,
    %c0_67 = arith.constant 0 : index
    %c0_68 = arith.constant 0 : index
    %c0_69 = arith.constant 0 : index
    %118 = vector.load %arg19[%c0_67, %c0_68, %c0_69] : memref<1x16x128xf32, #tpu.memory_space<vmem>>, vector<1x16x128xf32>
    %119 = vector.shape_cast %118 : vector<1x16x128xf32> to vector<16x128xf32>
    %120 = vector.shape_cast %114 : vector<16x128xf32> to vector<1x16x128xf32>
    tpu.vector_store %arg19[%c0_67, %c0_68, %c0_69], %120 {strides = array<i32>} : memref<1x16x128xf32, #tpu.memory_space<vmem>>, vector<1x16x128xf32>,
    return
  }
  func.func @transform_0(%arg0: i32) -> (i32, i32, i32, i32) {
    %c0_i32 = arith.constant 0 : i32
    %c0_i32_0 = arith.constant 0 : i32
    %c0_i32_1 = arith.constant 0 : i32
    %c0_i32_2 = arith.constant 0 : i32
    return %arg0, %c0_i32, %c0_i32_0, %c0_i32_1 : i32, i32, i32, i32
  }
  func.func @transform_1(%arg0: i32) -> (i32, i32, i32) {
    %c0_i32 = arith.constant 0 : i32
    %c0_i32_0 = arith.constant 0 : i32
    %c0_i32_1 = arith.constant 0 : i32
    %c0_i32_2 = arith.constant 0 : i32
    return %c0_i32, %c0_i32_0, %c0_i32_1 : i32, i32, i32
  }
  func.func @transform_2(%arg0: i32) -> (i32, i32, i32) {
    %c0_i32 = arith.constant 0 : i32
    %c0_i32_0 = arith.constant 0 : i32
    %c0_i32_1 = arith.constant 0 : i32
    %c0_i32_2 = arith.constant 0 : i32
    return %c0_i32, %c0_i32_0, %c0_i32_1 : i32, i32, i32
  }
  func.func @transform_3(%arg0: i32) -> (i32, i32) {
    %c0_i32 = arith.constant 0 : i32
    %c0_i32_0 = arith.constant 0 : i32
    %c0_i32_1 = arith.constant 0 : i32
    return %c0_i32, %c0_i32_0 : i32, i32
  }
  func.func @transform_4(%arg0: i32) -> (i32, i32, i32) {
    %c0_i32 = arith.constant 0 : i32
    %c0_i32_0 = arith.constant 0 : i32
    %c0_i32_1 = arith.constant 0 : i32
    %c0_i32_2 = arith.constant 0 : i32
    return %c0_i32, %c0_i32_0, %c0_i32_1 : i32, i32, i32
  }
  func.func @transform_5(%arg0: i32) -> (i32, i32) {
    %c0_i32 = arith.constant 0 : i32
    %c0_i32_0 = arith.constant 0 : i32
    %c0_i32_1 = arith.constant 0 : i32
    return %c0_i32, %c0_i32_0 : i32, i32
  }
  func.func @transform_6(%arg0: i32) -> (i32, i32) {
    %c0_i32 = arith.constant 0 : i32
    %c0_i32_0 = arith.constant 0 : i32
    %c0_i32_1 = arith.constant 0 : i32
    return %c0_i32, %c0_i32_0 : i32, i32
  }
  func.func @transform_7(%arg0: i32) -> (i32, i32) {
    %c0_i32 = arith.constant 0 : i32
    %c0_i32_0 = arith.constant 0 : i32
    %c0_i32_1 = arith.constant 0 : i32
    return %c0_i32, %c0_i32_0 : i32, i32
  }
  func.func @transform_8(%arg0: i32) -> (i32, i32) {
    %c0_i32 = arith.constant 0 : i32
    %c0_i32_0 = arith.constant 0 : i32
    %c0_i32_1 = arith.constant 0 : i32
    return %c0_i32, %c0_i32_0 : i32, i32
  }
  func.func @transform_9(%arg0: i32) -> (i32, i32) {
    %c0_i32 = arith.constant 0 : i32
    %c0_i32_0 = arith.constant 0 : i32
    %c0_i32_1 = arith.constant 0 : i32
    return %c0_i32, %c0_i32_0 : i32, i32
  }
  func.func @transform_10(%arg0: i32) -> (i32, i32) {
    %c0_i32 = arith.constant 0 : i32
    %c0_i32_0 = arith.constant 0 : i32
    %c0_i32_1 = arith.constant 0 : i32
    return %c0_i32, %c0_i32_0 : i32, i32
  }
  func.func @transform_11(%arg0: i32) -> (i32, i32) {
    %c0_i32 = arith.constant 0 : i32
    %c0_i32_0 = arith.constant 0 : i32
    %c0_i32_1 = arith.constant 0 : i32
    return %c0_i32, %c0_i32_0 : i32, i32
  }
  func.func @transform_12(%arg0: i32) -> (i32, i32) {
    %c0_i32 = arith.constant 0 : i32
    %c0_i32_0 = arith.constant 0 : i32
    %c0_i32_1 = arith.constant 0 : i32
    return %c0_i32, %c0_i32_0 : i32, i32
  }
  func.func @transform_13(%arg0: i32) -> (i32, i32) {
    %c0_i32 = arith.constant 0 : i32
    %c0_i32_0 = arith.constant 0 : i32
    %c0_i32_1 = arith.constant 0 : i32
    return %c0_i32, %c0_i32_0 : i32, i32
  }
  func.func @transform_14(%arg0: i32) -> (i32, i32) {
    %c0_i32 = arith.constant 0 : i32
    %c0_i32_0 = arith.constant 0 : i32
    %c0_i32_1 = arith.constant 0 : i32
    return %c0_i32, %c0_i32_0 : i32, i32
  }
  func.func @transform_15(%arg0: i32) -> (i32, i32) {
    %c0_i32 = arith.constant 0 : i32
    %c0_i32_0 = arith.constant 0 : i32
    %c0_i32_1 = arith.constant 0 : i32
    return %c0_i32, %c0_i32_0 : i32, i32
  }
  func.func @transform_16(%arg0: i32) -> (i32, i32, i32) {
    %c0_i32 = arith.constant 0 : i32
    %c0_i32_0 = arith.constant 0 : i32
    %c0_i32_1 = arith.constant 0 : i32
    return %arg0, %c0_i32, %c0_i32_0 : i32, i32, i32
  }
  func.func @transform_17(%arg0: i32) -> (i32, i32, i32) {
    %c0_i32 = arith.constant 0 : i32
    %c0_i32_0 = arith.constant 0 : i32
    %c0_i32_1 = arith.constant 0 : i32
    return %arg0, %c0_i32, %c0_i32_0 : i32, i32, i32
  }
  func.func @transform_18(%arg0: i32) -> (i32, i32, i32) {
    %c0_i32 = arith.constant 0 : i32
    %c0_i32_0 = arith.constant 0 : i32
    %c0_i32_1 = arith.constant 0 : i32
    return %arg0, %c0_i32, %c0_i32_0 : i32, i32, i32
  }
}

</mosaic_0001>

<llo_original>
// kernel: tpu_custom_call.1
$region0: #{tpu_custom_call.1}
  #allocation0 [shape = 'u32[]', space=smem, size = 0x4, offset = 0x4, fixed_abs, tag = 'smem constant byte address 0x4 - core index']
  #allocation1 [shape = 'u32[144,128]{1,0:T(1,128)}', space=vmem, size = 0x12000, scoped, tag = 'internal scratch']
  %s0 = inlined_call_operand.vmem [shape: bf16[2,4,128,16], index: 0, kind: input, shape index: {}]
  %s1 = inlined_call_operand.vmem [shape: bf16[4,16,16], index: 1, kind: input, shape index: {}]
  %s2 = inlined_call_operand.vmem [shape: bf16[4,1,16], index: 2, kind: input, shape index: {}]
  %s3 = inlined_call_operand.vmem [shape: f32[1,128], index: 3, kind: input, shape index: {}]
  %s4 = inlined_call_operand.vmem [shape: bf16[4,16,64], index: 4, kind: input, shape index: {}]
  %s5 = inlined_call_operand.vmem [shape: f32[1,64], index: 5, kind: input, shape index: {}]
  %s6 = inlined_call_operand.vmem [shape: f32[1,64], index: 6, kind: input, shape index: {}]
  %s7 = inlined_call_operand.vmem [shape: f32[1,64], index: 7, kind: input, shape index: {}]
  %s8 = inlined_call_operand.vmem [shape: bf16[64,256], index: 8, kind: input, shape index: {}]
  %s9 = inlined_call_operand.vmem [shape: f32[1,256], index: 9, kind: input, shape index: {}]
  %s10 = inlined_call_operand.vmem [shape: bf16[256,64], index: 10, kind: input, shape index: {}]
  %s11 = inlined_call_operand.vmem [shape: f32[1,64], index: 11, kind: input, shape index: {}]
  %s12 = inlined_call_operand.vmem [shape: f32[1,64], index: 12, kind: input, shape index: {}]
  %s13 = inlined_call_operand.vmem [shape: f32[1,64], index: 13, kind: input, shape index: {}]
  %s14 = inlined_call_operand.vmem [shape: bf16[64,128], index: 14, kind: input, shape index: {}]
  %s15 = inlined_call_operand.vmem [shape: f32[1,128], index: 15, kind: input, shape index: {}]
  %s16 = inlined_call_operand.hbm [shape: f32[2,16,64], index: 16, kind: output, shape index: {0}]
  %s17 = inlined_call_operand.hbm [shape: f32[2,1,128], index: 17, kind: output, shape index: {1}]
  %s18 = inlined_call_operand.hbm [shape: f32[2,16,128], index: 18, kind: output, shape index: {2}]
  %19 = xla_tuple %s16, %s17, %s18
  %s20 = sld [smem:[#allocation0]]
  $region113: #{tpu_custom_call.1} parent=0
    _
  %s22 = ssub.s32 1, %s20
  %s23 = scalar_select 0, %s22, %s20
  $region1: #{tpu_custom_call.1} parent=0
    #allocation2 [shape = 'u8[16384]{0}', space=vmem, size = 0x4000, scoped, tag = 'output window, operand 0']
    #allocation3 [shape = 's32[2]{0}', space=sflag, size = 0x8, scoped, tag = 'scoped memory for tpu_custom_call.1']
    #allocation4 [shape = 'u8[1024]{0}', space=vmem, size = 0x400, scoped, tag = 'output window, operand 1']
    #allocation5 [shape = 's32[2]{0}', space=sflag, size = 0x8, scoped, tag = 'scoped memory for tpu_custom_call.1']
    #allocation6 [shape = 'u8[16384]{0}', space=vmem, size = 0x4000, scoped, tag = 'output window, operand 2']
    %24 = vsyncpa [#allocation3], 0
    %s25 = scalar_lea.sflag [#allocation3], 1
    %26 = vsyncpa %s25, 0
    %27 = vsyncpa [#allocation5], 0
    %s28 = scalar_lea.sflag [#allocation5], 1
    %29 = vsyncpa %s28, 0
    loop: start=0, step=1, limit=4
    $region2: #{tpu_custom_call.1} parent=1 // loop_pre_header
      _
    $region3: #{tpu_custom_call.1} parent=1 // loop_header
      %s31 = sphi 0, %s35
      %p32 = scmp.ge.s32.totalorder %s31, 4
      %s41 = sphi 0, %s43
      %s44 = sphi 0, %s41
      %s45 = sphi 0, %s44
      %s61 = sphi 0, %s45
      %s65 = sphi 0, %s65
      %s67 = sphi 0, %s65
      %s68 = sphi 0, %s67
      %s82 = sphi 0, %s68
      %s86 = sphi 0, %s86
      %s88 = sphi 0, %s86
      %s89 = sphi 0, %s88
      %s103 = sphi 0, %s89
      %s107 = sphi 0, %s107
      %s109 = sphi 0, %s107
      %s110 = sphi 0, %s109
      %s124 = sphi 0, %s110
      %s128 = sphi 0, %s128
      %s130 = sphi 0, %s128
      %s131 = sphi 0, %s130
      %s145 = sphi 0, %s131
      %s149 = sphi 0, %s149
      %s151 = sphi 0, %s149
      %s152 = sphi 0, %s151
      %s166 = sphi 0, %s152
      %s170 = sphi 0, %s170
      %s172 = sphi 0, %s170
      %s173 = sphi 0, %s172
      %s187 = sphi 0, %s173
      %s191 = sphi 0, %s191
      %s193 = sphi 0, %s191
      %s194 = sphi 0, %s193
      %s208 = sphi 0, %s194
      %s212 = sphi 0, %s212
      %s214 = sphi 0, %s212
      %s215 = sphi 0, %s214
      %s229 = sphi 0, %s215
      %s233 = sphi 0, %s233
      %s235 = sphi 0, %s233
      %s236 = sphi 0, %s235
      %s250 = sphi 0, %s236
      %s254 = sphi 0, %s254
      %s256 = sphi 0, %s254
      %s257 = sphi 0, %s256
      %s271 = sphi 0, %s257
      %s275 = sphi 0, %s275
      %s277 = sphi 0, %s275
      %s278 = sphi 0, %s277
      %s292 = sphi 0, %s278
      %s296 = sphi 0, %s296
      %s298 = sphi 0, %s296
      %s299 = sphi 0, %s298
      %s313 = sphi 0, %s299
      %s317 = sphi 0, %s317
      %s319 = sphi 0, %s317
      %s320 = sphi 0, %s319
      %s334 = sphi 0, %s320
      %s338 = sphi 0, %s338
      %s340 = sphi 0, %s338
      %s341 = sphi 0, %s340
      %s355 = sphi 0, %s341
      %s359 = sphi 0, %s359
      %s361 = sphi 0, %s359
      %s362 = sphi 0, %s361
      %s376 = sphi 0, %s362
      %s382 = sphi 0, %s384
      %s385 = sphi 0, %s382
      %s386 = sphi 0, %s385
      %s402 = sphi 0, %s386
      %s408 = sphi 0, %s410
      %s411 = sphi 0, %s408
      %s412 = sphi 0, %s411
      %s428 = sphi 0, %s412
      %s434 = sphi 0, %s436
      %s437 = sphi 0, %s434
      %s438 = sphi 0, %s437
      %s454 = sphi 0, %s438
    $region4: #{tpu_custom_call.1} parent=1 // loop_header_branch
      %34 = sbr.rel (%p32) target = $region8
    $region5: #{tpu_custom_call.1} parent=1 // loop_body
      %s36 = ssub.s32 %s31, 1
      %s37 = ssub.s32 %s31, 2
      %s38 = sadd.s32 %s31, 1
      %s39 = ssub.s32 %s31, %s38
      %p40 = scmp.eq.s32.totalorder %s39, 0
      %s42 = sadd.s32 %s41, 1
      %s43 = scalar_select %p40, %s41, %s42
      %p46 = pneg %p40
      %p47 = scmp.eq.s32.totalorder %s31, 1
      %p48 = por %p46, %p47
      %p49 = scmp.ne.s32.totalorder %s41, %s44
      %p50 = scmp.eq.s32.totalorder %s31, 0
      %p51 = por %p49, %p50
      %p52 = scmp.ne.s32.totalorder %s41, %s44
      %p53 = scmp.eq.s32.totalorder %s36, 1
      %p54 = por %p52, %p53
      %p55 = scmp.ne.s32.totalorder %s44, %s45
      %p56 = scmp.eq.s32.totalorder %s36, 0
      %p57 = por %p55, %p56
      %p58 = scmp.ne.s32.totalorder %s44, %s45
      %p59 = scmp.eq.s32.totalorder %s37, 1
      %p60 = por %p58, %p59
      %p62 = scmp.ne.s32.totalorder %s45, %s61
      %p63 = scmp.eq.s32.totalorder %s37, 0
      %p64 = por %p62, %p63
      %s66 = sadd.s32 %s65, 1
      %p69 = scmp.eq.s32.totalorder %s31, 1
      %p70 = scmp.ne.s32.totalorder %s65, %s67
      %p71 = scmp.eq.s32.totalorder %s31, 0
      %p72 = por %p70, %p71
      %p73 = scmp.ne.s32.totalorder %s65, %s67
      %p74 = scmp.eq.s32.totalorder %s36, 1
      %p75 = por %p73, %p74
      %p76 = scmp.ne.s32.totalorder %s67, %s68
      %p77 = scmp.eq.s32.totalorder %s36, 0
      %p78 = por %p76, %p77
      %p79 = scmp.ne.s32.totalorder %s67, %s68
      %p80 = scmp.eq.s32.totalorder %s37, 1
      %p81 = por %p79, %p80
      %p83 = scmp.ne.s32.totalorder %s68, %s82
      %p84 = scmp.eq.s32.totalorder %s37, 0
      %p85 = por %p83, %p84
      %s87 = sadd.s32 %s86, 1
      %p90 = scmp.eq.s32.totalorder %s31, 1
      %p91 = scmp.ne.s32.totalorder %s86, %s88
      %p92 = scmp.eq.s32.totalorder %s31, 0
      %p93 = por %p91, %p92
      %p94 = scmp.ne.s32.totalorder %s86, %s88
      %p95 = scmp.eq.s32.totalorder %s36, 1
      %p96 = por %p94, %p95
      %p97 = scmp.ne.s32.totalorder %s88, %s89
      %p98 = scmp.eq.s32.totalorder %s36, 0
      %p99 = por %p97, %p98
      %p100 = scmp.ne.s32.totalorder %s88, %s89
      %p101 = scmp.eq.s32.totalorder %s37, 1
      %p102 = por %p100, %p101
      %p104 = scmp.ne.s32.totalorder %s89, %s103
      %p105 = scmp.eq.s32.totalorder %s37, 0
      %p106 = por %p104, %p105
      %s108 = sadd.s32 %s107, 1
      %p111 = scmp.eq.s32.totalorder %s31, 1
      %p112 = scmp.ne.s32.totalorder %s107, %s109
      %p113 = scmp.eq.s32.totalorder %s31, 0
      %p114 = por %p112, %p113
      %p115 = scmp.ne.s32.totalorder %s107, %s109
      %p116 = scmp.eq.s32.totalorder %s36, 1
      %p117 = por %p115, %p116
      %p118 = scmp.ne.s32.totalorder %s109, %s110
      %p119 = scmp.eq.s32.totalorder %s36, 0
      %p120 = por %p118, %p119
      %p121 = scmp.ne.s32.totalorder %s109, %s110
      %p122 = scmp.eq.s32.totalorder %s37, 1
      %p123 = por %p121, %p122
      %p125 = scmp.ne.s32.totalorder %s110, %s124
      %p126 = scmp.eq.s32.totalorder %s37, 0
      %p127 = por %p125, %p126
      %s129 = sadd.s32 %s128, 1
      %p132 = scmp.eq.s32.totalorder %s31, 1
      %p133 = scmp.ne.s32.totalorder %s128, %s130
      %p134 = scmp.eq.s32.totalorder %s31, 0
      %p135 = por %p133, %p134
      %p136 = scmp.ne.s32.totalorder %s128, %s130
      %p137 = scmp.eq.s32.totalorder %s36, 1
      %p138 = por %p136, %p137
      %p139 = scmp.ne.s32.totalorder %s130, %s131
      %p140 = scmp.eq.s32.totalorder %s36, 0
      %p141 = por %p139, %p140
      %p142 = scmp.ne.s32.totalorder %s130, %s131
      %p143 = scmp.eq.s32.totalorder %s37, 1
      %p144 = por %p142, %p143
      %p146 = scmp.ne.s32.totalorder %s131, %s145
      %p147 = scmp.eq.s32.totalorder %s37, 0
      %p148 = por %p146, %p147
      %s150 = sadd.s32 %s149, 1
      %p153 = scmp.eq.s32.totalorder %s31, 1
      %p154 = scmp.ne.s32.totalorder %s149, %s151
      %p155 = scmp.eq.s32.totalorder %s31, 0
      %p156 = por %p154, %p155
      %p157 = scmp.ne.s32.totalorder %s149, %s151
      %p158 = scmp.eq.s32.totalorder %s36, 1
      %p159 = por %p157, %p158
      %p160 = scmp.ne.s32.totalorder %s151, %s152
      %p161 = scmp.eq.s32.totalorder %s36, 0
      %p162 = por %p160, %p161
      %p163 = scmp.ne.s32.totalorder %s151, %s152
      %p164 = scmp.eq.s32.totalorder %s37, 1
      %p165 = por %p163, %p164
      %p167 = scmp.ne.s32.totalorder %s152, %s166
      %p168 = scmp.eq.s32.totalorder %s37, 0
      %p169 = por %p167, %p168
      %s171 = sadd.s32 %s170, 1
      %p174 = scmp.eq.s32.totalorder %s31, 1
      %p175 = scmp.ne.s32.totalorder %s170, %s172
      %p176 = scmp.eq.s32.totalorder %s31, 0
      %p177 = por %p175, %p176
      %p178 = scmp.ne.s32.totalorder %s170, %s172
      %p179 = scmp.eq.s32.totalorder %s36, 1
      %p180 = por %p178, %p179
      %p181 = scmp.ne.s32.totalorder %s172, %s173
      %p182 = scmp.eq.s32.totalorder %s36, 0
      %p183 = por %p181, %p182
      %p184 = scmp.ne.s32.totalorder %s172, %s173
      %p185 = scmp.eq.s32.totalorder %s37, 1
      %p186 = por %p184, %p185
      %p188 = scmp.ne.s32.totalorder %s173, %s187
      %p189 = scmp.eq.s32.totalorder %s37, 0
      %p190 = por %p188, %p189
      %s192 = sadd.s32 %s191, 1
      %p195 = scmp.eq.s32.totalorder %s31, 1
      %p196 = scmp.ne.s32.totalorder %s191, %s193
      %p197 = scmp.eq.s32.totalorder %s31, 0
      %p198 = por %p196, %p197
      %p199 = scmp.ne.s32.totalorder %s191, %s193
      %p200 = scmp.eq.s32.totalorder %s36, 1
      %p201 = por %p199, %p200
      %p202 = scmp.ne.s32.totalorder %s193, %s194
      %p203 = scmp.eq.s32.totalorder %s36, 0
      %p204 = por %p202, %p203
      %p205 = scmp.ne.s32.totalorder %s193, %s194
      %p206 = scmp.eq.s32.totalorder %s37, 1
      %p207 = por %p205, %p206
      %p209 = scmp.ne.s32.totalorder %s194, %s208
      %p210 = scmp.eq.s32.totalorder %s37, 0
      %p211 = por %p209, %p210
      %s213 = sadd.s32 %s212, 1
      %p216 = scmp.eq.s32.totalorder %s31, 1
      %p217 = scmp.ne.s32.totalorder %s212, %s214
      %p218 = scmp.eq.s32.totalorder %s31, 0
      %p219 = por %p217, %p218
      %p220 = scmp.ne.s32.totalorder %s212, %s214
      %p221 = scmp.eq.s32.totalorder %s36, 1
      %p222 = por %p220, %p221
      %p223 = scmp.ne.s32.totalorder %s214, %s215
      %p224 = scmp.eq.s32.totalorder %s36, 0
      %p225 = por %p223, %p224
      %p226 = scmp.ne.s32.totalorder %s214, %s215
      %p227 = scmp.eq.s32.totalorder %s37, 1
      %p228 = por %p226, %p227
      %p230 = scmp.ne.s32.totalorder %s215, %s229
      %p231 = scmp.eq.s32.totalorder %s37, 0
      %p232 = por %p230, %p231
      %s234 = sadd.s32 %s233, 1
      %p237 = scmp.eq.s32.totalorder %s31, 1
      %p238 = scmp.ne.s32.totalorder %s233, %s235
      %p239 = scmp.eq.s32.totalorder %s31, 0
      %p240 = por %p238, %p239
      %p241 = scmp.ne.s32.totalorder %s233, %s235
      %p242 = scmp.eq.s32.totalorder %s36, 1
      %p243 = por %p241, %p242
      %p244 = scmp.ne.s32.totalorder %s235, %s236
      %p245 = scmp.eq.s32.totalorder %s36, 0
      %p246 = por %p244, %p245
      %p247 = scmp.ne.s32.totalorder %s235, %s236
      %p248 = scmp.eq.s32.totalorder %s37, 1
      %p249 = por %p247, %p248
      %p251 = scmp.ne.s32.totalorder %s236, %s250
      %p252 = scmp.eq.s32.totalorder %s37, 0
      %p253 = por %p251, %p252
      %s255 = sadd.s32 %s254, 1
      %p258 = scmp.eq.s32.totalorder %s31, 1
      %p259 = scmp.ne.s32.totalorder %s254, %s256
      %p260 = scmp.eq.s32.totalorder %s31, 0
      %p261 = por %p259, %p260
      %p262 = scmp.ne.s32.totalorder %s254, %s256
      %p263 = scmp.eq.s32.totalorder %s36, 1
      %p264 = por %p262, %p263
      %p265 = scmp.ne.s32.totalorder %s256, %s257
      %p266 = scmp.eq.s32.totalorder %s36, 0
      %p267 = por %p265, %p266
      %p268 = scmp.ne.s32.totalorder %s256, %s257
      %p269 = scmp.eq.s32.totalorder %s37, 1
      %p270 = por %p268, %p269
      %p272 = scmp.ne.s32.totalorder %s257, %s271
      %p273 = scmp.eq.s32.totalorder %s37, 0
      %p274 = por %p272, %p273
      %s276 = sadd.s32 %s275, 1
      %p279 = scmp.eq.s32.totalorder %s31, 1
      %p280 = scmp.ne.s32.totalorder %s275, %s277
      %p281 = scmp.eq.s32.totalorder %s31, 0
      %p282 = por %p280, %p281
      %p283 = scmp.ne.s32.totalorder %s275, %s277
      %p284 = scmp.eq.s32.totalorder %s36, 1
      %p285 = por %p283, %p284
      %p286 = scmp.ne.s32.totalorder %s277, %s278
      %p287 = scmp.eq.s32.totalorder %s36, 0
      %p288 = por %p286, %p287
      %p289 = scmp.ne.s32.totalorder %s277, %s278
      %p290 = scmp.eq.s32.totalorder %s37, 1
      %p291 = por %p289, %p290
      %p293 = scmp.ne.s32.totalorder %s278, %s292
      %p294 = scmp.eq.s32.totalorder %s37, 0
      %p295 = por %p293, %p294
      %s297 = sadd.s32 %s296, 1
      %p300 = scmp.eq.s32.totalorder %s31, 1
      %p301 = scmp.ne.s32.totalorder %s296, %s298
      %p302 = scmp.eq.s32.totalorder %s31, 0
      %p303 = por %p301, %p302
      %p304 = scmp.ne.s32.totalorder %s296, %s298
      %p305 = scmp.eq.s32.totalorder %s36, 1
      %p306 = por %p304, %p305
      %p307 = scmp.ne.s32.totalorder %s298, %s299
      %p308 = scmp.eq.s32.totalorder %s36, 0
      %p309 = por %p307, %p308
      %p310 = scmp.ne.s32.totalorder %s298, %s299
      %p311 = scmp.eq.s32.totalorder %s37, 1
      %p312 = por %p310, %p311
      %p314 = scmp.ne.s32.totalorder %s299, %s313
      %p315 = scmp.eq.s32.totalorder %s37, 0
      %p316 = por %p314, %p315
      %s318 = sadd.s32 %s317, 1
      %p321 = scmp.eq.s32.totalorder %s31, 1
      %p322 = scmp.ne.s32.totalorder %s317, %s319
      %p323 = scmp.eq.s32.totalorder %s31, 0
      %p324 = por %p322, %p323
      %p325 = scmp.ne.s32.totalorder %s317, %s319
      %p326 = scmp.eq.s32.totalorder %s36, 1
      %p327 = por %p325, %p326
      %p328 = scmp.ne.s32.totalorder %s319, %s320
      %p329 = scmp.eq.s32.totalorder %s36, 0
      %p330 = por %p328, %p329
      %p331 = scmp.ne.s32.totalorder %s319, %s320
      %p332 = scmp.eq.s32.totalorder %s37, 1
      %p333 = por %p331, %p332
      %p335 = scmp.ne.s32.totalorder %s320, %s334
      %p336 = scmp.eq.s32.totalorder %s37, 0
      %p337 = por %p335, %p336
      %s339 = sadd.s32 %s338, 1
      %p342 = scmp.eq.s32.totalorder %s31, 1
      %p343 = scmp.ne.s32.totalorder %s338, %s340
      %p344 = scmp.eq.s32.totalorder %s31, 0
      %p345 = por %p343, %p344
      %p346 = scmp.ne.s32.totalorder %s338, %s340
      %p347 = scmp.eq.s32.totalorder %s36, 1
      %p348 = por %p346, %p347
      %p349 = scmp.ne.s32.totalorder %s340, %s341
      %p350 = scmp.eq.s32.totalorder %s36, 0
      %p351 = por %p349, %p350
      %p352 = scmp.ne.s32.totalorder %s340, %s341
      %p353 = scmp.eq.s32.totalorder %s37, 1
      %p354 = por %p352, %p353
      %p356 = scmp.ne.s32.totalorder %s341, %s355
      %p357 = scmp.eq.s32.totalorder %s37, 0
      %p358 = por %p356, %p357
      %s360 = sadd.s32 %s359, 1
      %p363 = scmp.eq.s32.totalorder %s31, 1
      %p364 = scmp.ne.s32.totalorder %s359, %s361
      %p365 = scmp.eq.s32.totalorder %s31, 0
      %p366 = por %p364, %p365
      %p367 = scmp.ne.s32.totalorder %s359, %s361
      %p368 = scmp.eq.s32.totalorder %s36, 1
      %p369 = por %p367, %p368
      %p370 = scmp.ne.s32.totalorder %s361, %s362
      %p371 = scmp.eq.s32.totalorder %s36, 0
      %p372 = por %p370, %p371
      %p373 = scmp.ne.s32.totalorder %s361, %s362
      %p374 = scmp.eq.s32.totalorder %s37, 1
      %p375 = por %p373, %p374
      %p377 = scmp.ne.s32.totalorder %s362, %s376
      %p378 = scmp.eq.s32.totalorder %s37, 0
      %p379 = por %p377, %p378
      %s380 = ssub.s32 %s31, %s38
      %p381 = scmp.eq.s32.totalorder %s380, 0
      %s383 = sadd.s32 %s382, 1
      %s384 = scalar_select %p381, %s382, %s383
      %p387 = pneg %p381
      %p388 = scmp.eq.s32.totalorder %s31, 1
      %p389 = por %p387, %p388
      %p390 = scmp.ne.s32.totalorder %s382, %s385
      %p391 = scmp.eq.s32.totalorder %s31, 0
      %p392 = por %p390, %p391
      %p393 = scmp.ne.s32.totalorder %s382, %s385
      %p394 = scmp.eq.s32.totalorder %s36, 1
      %p395 = por %p393, %p394
      %p396 = scmp.ne.s32.totalorder %s385, %s386
      %p397 = scmp.eq.s32.totalorder %s36, 0
      %p398 = por %p396, %p397
      %p399 = scmp.ne.s32.totalorder %s385, %s386
      %p400 = scmp.eq.s32.totalorder %s37, 1
      %p401 = por %p399, %p400
      %p403 = scmp.ne.s32.totalorder %s386, %s402
      %p404 = scmp.eq.s32.totalorder %s37, 0
      %p405 = por %p403, %p404
      %s406 = ssub.s32 %s31, %s38
      %p407 = scmp.eq.s32.totalorder %s406, 0
      %s409 = sadd.s32 %s408, 1
      %s410 = scalar_select %p407, %s408, %s409
      %p413 = pneg %p407
      %p414 = scmp.eq.s32.totalorder %s31, 1
      %p415 = por %p413, %p414
      %p416 = scmp.ne.s32.totalorder %s408, %s411
      %p417 = scmp.eq.s32.totalorder %s31, 0
      %p418 = por %p416, %p417
      %p419 = scmp.ne.s32.totalorder %s408, %s411
      %p420 = scmp.eq.s32.totalorder %s36, 1
      %p421 = por %p419, %p420
      %p422 = scmp.ne.s32.totalorder %s411, %s412
      %p423 = scmp.eq.s32.totalorder %s36, 0
      %p424 = por %p422, %p423
      %p425 = scmp.ne.s32.totalorder %s411, %s412
      %p426 = scmp.eq.s32.totalorder %s37, 1
      %p427 = por %p425, %p426
      %p429 = scmp.ne.s32.totalorder %s412, %s428
      %p430 = scmp.eq.s32.totalorder %s37, 0
      %p431 = por %p429, %p430
      %s432 = ssub.s32 %s31, %s38
      %p433 = scmp.eq.s32.totalorder %s432, 0
      %s435 = sadd.s32 %s434, 1
      %s436 = scalar_select %p433, %s434, %s435
      %p439 = pneg %p433
      %p440 = scmp.eq.s32.totalorder %s31, 1
      %p441 = por %p439, %p440
      %p442 = scmp.ne.s32.totalorder %s434, %s437
      %p443 = scmp.eq.s32.totalorder %s31, 0
      %p444 = por %p442, %p443
      %p445 = scmp.ne.s32.totalorder %s434, %s437
      %p446 = scmp.eq.s32.totalorder %s36, 1
      %p447 = por %p445, %p446
      %p448 = scmp.ne.s32.totalorder %s437, %s438
      %p449 = scmp.eq.s32.totalorder %s36, 0
      %p450 = por %p448, %p449
      %p451 = scmp.ne.s32.totalorder %s437, %s438
      %p452 = scmp.eq.s32.totalorder %s37, 1
      %p453 = por %p451, %p452
      %p455 = scmp.ne.s32.totalorder %s438, %s454
      %p456 = scmp.eq.s32.totalorder %s37, 0
      %p457 = por %p455, %p456
      %p458 = scmp.le.s32.totalorder 1, %s31
      %p459 = scmp.lt.s32.totalorder %s31, 3
      %p460 = pnand %p458, %p459
      %p461 = pneg %p460
      // Predicated region
      $region9: #{tpu_custom_call.1} parent=5 // pred_check
        _
      $region10: #{tpu_custom_call.1} parent=5 // pred_check_branch
        %463 = sbr.rel (%p460) target = $region12
      $region11: #{tpu_custom_call.1} parent=5 // pred_region
        %s464 = ssub.s32 %s31, 1
        // Predicated region
        $region13: #{tpu_custom_call.1} parent=11 // pred_check
          %p465 = pneg %p78
        $region14: #{tpu_custom_call.1} parent=11 // pred_check_branch
          %467 = sbr.rel (%p465) target = $region16
        $region15: #{tpu_custom_call.1} parent=11 // pred_region
          _
        $region16: #{tpu_custom_call.1} parent=11 // pred_fallthru
          _
        // Predicated region
        $region17: #{tpu_custom_call.1} parent=11 // pred_check
          %p468 = pneg %p99
        $region18: #{tpu_custom_call.1} parent=11 // pred_check_branch
          %470 = sbr.rel (%p468) target = $region20
        $region19: #{tpu_custom_call.1} parent=11 // pred_region
          _
        $region20: #{tpu_custom_call.1} parent=11 // pred_fallthru
          _
        // Predicated region
        $region21: #{tpu_custom_call.1} parent=11 // pred_check
          %p471 = pneg %p120
        $region22: #{tpu_custom_call.1} parent=11 // pred_check_branch
          %473 = sbr.rel (%p471) target = $region24
        $region23: #{tpu_custom_call.1} parent=11 // pred_region
          _
        $region24: #{tpu_custom_call.1} parent=11 // pred_fallthru
          _
        // Predicated region
        $region25: #{tpu_custom_call.1} parent=11 // pred_check
          %p474 = pneg %p141
        $region26: #{tpu_custom_call.1} parent=11 // pred_check_branch
          %476 = sbr.rel (%p474) target = $region28
        $region27: #{tpu_custom_call.1} parent=11 // pred_region
          _
        $region28: #{tpu_custom_call.1} parent=11 // pred_fallthru
          _
        // Predicated region
        $region29: #{tpu_custom_call.1} parent=11 // pred_check
          %p477 = pneg %p162
        $region30: #{tpu_custom_call.1} parent=11 // pred_check_branch
          %479 = sbr.rel (%p477) target = $region32
        $region31: #{tpu_custom_call.1} parent=11 // pred_region
          _
        $region32: #{tpu_custom_call.1} parent=11 // pred_fallthru
          _
        // Predicated region
        $region33: #{tpu_custom_call.1} parent=11 // pred_check
          %p480 = pneg %p183
        $region34: #{tpu_custom_call.1} parent=11 // pred_check_branch
          %482 = sbr.rel (%p480) target = $region36
        $region35: #{tpu_custom_call.1} parent=11 // pred_region
          _
        $region36: #{tpu_custom_call.1} parent=11 // pred_fallthru
          _
        // Predicated region
        $region37: #{tpu_custom_call.1} parent=11 // pred_check
          %p483 = pneg %p204
        $region38: #{tpu_custom_call.1} parent=11 // pred_check_branch
          %485 = sbr.rel (%p483) target = $region40
        $region39: #{tpu_custom_call.1} parent=11 // pred_region
          _
        $region40: #{tpu_custom_call.1} parent=11 // pred_fallthru
          _
        // Predicated region
        $region41: #{tpu_custom_call.1} parent=11 // pred_check
          %p486 = pneg %p225
        $region42: #{tpu_custom_call.1} parent=11 // pred_check_branch
          %488 = sbr.rel (%p486) target = $region44
        $region43: #{tpu_custom_call.1} parent=11 // pred_region
          _
        $region44: #{tpu_custom_call.1} parent=11 // pred_fallthru
          _
        // Predicated region
        $region45: #{tpu_custom_call.1} parent=11 // pred_check
          %p489 = pneg %p246
        $region46: #{tpu_custom_call.1} parent=11 // pred_check_branch
          %491 = sbr.rel (%p489) target = $region48
        $region47: #{tpu_custom_call.1} parent=11 // pred_region
          _
        $region48: #{tpu_custom_call.1} parent=11 // pred_fallthru
          _
        // Predicated region
        $region49: #{tpu_custom_call.1} parent=11 // pred_check
          %p492 = pneg %p267
        $region50: #{tpu_custom_call.1} parent=11 // pred_check_branch
          %494 = sbr.rel (%p492) target = $region52
        $region51: #{tpu_custom_call.1} parent=11 // pred_region
          _
        $region52: #{tpu_custom_call.1} parent=11 // pred_fallthru
          _
        // Predicated region
        $region53: #{tpu_custom_call.1} parent=11 // pred_check
          %p495 = pneg %p288
        $region54: #{tpu_custom_call.1} parent=11 // pred_check_branch
          %497 = sbr.rel (%p495) target = $region56
        $region55: #{tpu_custom_call.1} parent=11 // pred_region
          _
        $region56: #{tpu_custom_call.1} parent=11 // pred_fallthru
          _
        // Predicated region
        $region57: #{tpu_custom_call.1} parent=11 // pred_check
          %p498 = pneg %p309
        $region58: #{tpu_custom_call.1} parent=11 // pred_check_branch
          %500 = sbr.rel (%p498) target = $region60
        $region59: #{tpu_custom_call.1} parent=11 // pred_region
          _
        $region60: #{tpu_custom_call.1} parent=11 // pred_fallthru
          _
        // Predicated region
        $region61: #{tpu_custom_call.1} parent=11 // pred_check
          %p501 = pneg %p330
        $region62: #{tpu_custom_call.1} parent=11 // pred_check_branch
          %503 = sbr.rel (%p501) target = $region64
        $region63: #{tpu_custom_call.1} parent=11 // pred_region
          _
        $region64: #{tpu_custom_call.1} parent=11 // pred_fallthru
          _
        // Predicated region
        $region65: #{tpu_custom_call.1} parent=11 // pred_check
          %p504 = pneg %p351
        $region66: #{tpu_custom_call.1} parent=11 // pred_check_branch
          %506 = sbr.rel (%p504) target = $region68
        $region67: #{tpu_custom_call.1} parent=11 // pred_region
          _
        $region68: #{tpu_custom_call.1} parent=11 // pred_fallthru
          _
        // Predicated region
        $region69: #{tpu_custom_call.1} parent=11 // pred_check
          %p507 = pneg %p372
        $region70: #{tpu_custom_call.1} parent=11 // pred_check_branch
          %509 = sbr.rel (%p507) target = $region72
        $region71: #{tpu_custom_call.1} parent=11 // pred_region
          _
        $region72: #{tpu_custom_call.1} parent=11 // pred_fallthru
          _
      $region12: #{tpu_custom_call.1} parent=5 // pred_fallthru
        _
      %p510 = scmp.lt.s32.totalorder %s31, 2
      // Predicated region
      $region73: #{tpu_custom_call.1} parent=5 // pred_check
        %p511 = pneg %p510
      $region74: #{tpu_custom_call.1} parent=5 // pred_check_branch
        %513 = sbr.rel (%p511) target = $region76
      $region75: #{tpu_custom_call.1} parent=5 // pred_region
        // Predicated region
        $region77: #{tpu_custom_call.1} parent=75 // pred_check
          %p514 = pneg %p51
        $region78: #{tpu_custom_call.1} parent=75 // pred_check_branch
          %516 = sbr.rel (%p514) target = $region80
        $region79: #{tpu_custom_call.1} parent=75 // pred_region
          %p517 = scmp.lt.s32.totalorder %s31, 1
          %s518 = scalar_select %p517, %s31, 1
          %s519 = smul.addr %s518, 64
          %s520 = smul.addr %s519, 4
          %s521 = scalar_lea.vmem %s0, %s520
        $region80: #{tpu_custom_call.1} parent=75 // pred_fallthru
          _
      $region76: #{tpu_custom_call.1} parent=5 // pred_fallthru
        _
      %p522 = scmp.le.s32.totalorder 1, %s31
      %p523 = scmp.lt.s32.totalorder %s31, 3
      %p524 = pnand %p522, %p523
      %p525 = pneg %p524
      // Predicated region
      $region81: #{tpu_custom_call.1} parent=5 // pred_check
        _
      $region82: #{tpu_custom_call.1} parent=5 // pred_check_branch
        %527 = sbr.rel (%p524) target = $region84
      $region83: #{tpu_custom_call.1} parent=5 // pred_region
        %s528 = ssub.s32 %s31, 1
        %p529 = scmp.lt.s32.totalorder %s36, 1
        %s530 = scalar_select %p529, %s36, 1
        %s531 = smul.addr %s530, 64
        %s532 = smul.addr %s531, 4
        %s533 = scalar_lea.vmem %s0, %s532
        %p534 = pneg %p57
        %p535 = pneg %p54
        %p536 = pneg %p78
        %p537 = pneg %p75
        %p538 = pneg %p99
        %p539 = pneg %p96
        %p540 = pneg %p120
        %p541 = pneg %p117
        %p542 = pneg %p141
        %p543 = pneg %p138
        %p544 = pneg %p162
        %p545 = pneg %p159
        %p546 = pneg %p183
        %p547 = pneg %p180
        %p548 = pneg %p204
        %p549 = pneg %p201
        %p550 = pneg %p225
        %p551 = pneg %p222
        %p552 = pneg %p246
        %p553 = pneg %p243
        %p554 = pneg %p267
        %p555 = pneg %p264
        %p556 = pneg %p288
        %p557 = pneg %p285
        %p558 = pneg %p309
        %p559 = pneg %p306
        %p560 = pneg %p330
        %p561 = pneg %p327
        %p562 = pneg %p351
        %p563 = pneg %p348
        %p564 = pneg %p372
        %p565 = pneg %p369
        %p566 = pneg %p398
        %p567 = pneg %p395
        %s568 = sand.u32 %s385, 1
        %s569 = scalar_lea.sflag [#allocation3], %s568
        %s570 = sand.u32 %s385, 1
        %s571 = smul.addr %s570, 16
        %s572 = scalar_lea.vmem [#allocation2], %s571
        %p573 = pneg %p424
        %p574 = pneg %p421
        %s575 = sand.u32 %s36, 1
        %s576 = scalar_lea.sflag [#allocation5], %s575
        %s577 = sand.u32 %s411, 1
        %s578 = scalar_lea.vmem [#allocation4], %s577
        %p579 = pneg %p450
        %p580 = pneg %p447
        %s581 = sand.u32 %s36, 1
        %s582 = scalar_lea.sflag [#allocation5], %s581
        %s583 = sand.u32 %s437, 1
        %s584 = smul.addr %s583, 16
        %s585 = scalar_lea.vmem [#allocation6], %s584
        %p586 = scmp.lt.s32.totalorder %s36, 1
        %s587 = scalar_select %p586, %s36, 1
        %s588 = smul.addr %s587, 64
        %s589 = smul.addr %s588, 4
        %s590 = scalar_lea.vmem %s0, %s589
        %v592 = vld [vmem:[%s590] sm:$0xf]
        %v593 = vld [vmem:[%s590 + $0x4] sm:$0xf]
        %v594 = vld [vmem:[%s590 + $0x8] sm:$0xf]
        %v595 = vld [vmem:[%s590 + $0xc] sm:$0xf]
        %v596 = vld [vmem:[%s590 + $0x10] sm:$0xf]
        %v597 = vld [vmem:[%s590 + $0x14] sm:$0xf]
        %v598 = vld [vmem:[%s590 + $0x18] sm:$0xf]
        %v599 = vld [vmem:[%s590 + $0x1c] sm:$0xf]
        %v600 = vld [vmem:[%s590 + $0x20] sm:$0xf]
        %v601 = vld [vmem:[%s590 + $0x24] sm:$0xf]
        %v602 = vld [vmem:[%s590 + $0x28] sm:$0xf]
        %v603 = vld [vmem:[%s590 + $0x2c] sm:$0xf]
        %v604 = vld [vmem:[%s590 + $0x30] sm:$0xf]
        %v605 = vld [vmem:[%s590 + $0x34] sm:$0xf]
        %v606 = vld [vmem:[%s590 + $0x38] sm:$0xf]
        %v607 = vld [vmem:[%s590 + $0x3c] sm:$0xf]
        %v608 = vld [vmem:[%s590 + $0x40] sm:$0xf]
        %v609 = vld [vmem:[%s590 + $0x44] sm:$0xf]
        %v610 = vld [vmem:[%s590 + $0x48] sm:$0xf]
        %v611 = vld [vmem:[%s590 + $0x4c] sm:$0xf]
        %v612 = vld [vmem:[%s590 + $0x50] sm:$0xf]
        %v613 = vld [vmem:[%s590 + $0x54] sm:$0xf]
        %v614 = vld [vmem:[%s590 + $0x58] sm:$0xf]
        %v615 = vld [vmem:[%s590 + $0x5c] sm:$0xf]
        %v616 = vld [vmem:[%s590 + $0x60] sm:$0xf]
        %v617 = vld [vmem:[%s590 + $0x64] sm:$0xf]
        %v618 = vld [vmem:[%s590 + $0x68] sm:$0xf]
        %v619 = vld [vmem:[%s590 + $0x6c] sm:$0xf]
        %v620 = vld [vmem:[%s590 + $0x70] sm:$0xf]
        %v621 = vld [vmem:[%s590 + $0x74] sm:$0xf]
        %v622 = vld [vmem:[%s590 + $0x78] sm:$0xf]
        %v623 = vld [vmem:[%s590 + $0x7c] sm:$0xf]
        %v624 = vld [vmem:[%s590 + $0x80] sm:$0xf]
        %v625 = vld [vmem:[%s590 + $0x84] sm:$0xf]
        %v626 = vld [vmem:[%s590 + $0x88] sm:$0xf]
        %v627 = vld [vmem:[%s590 + $0x8c] sm:$0xf]
        %v628 = vld [vmem:[%s590 + $0x90] sm:$0xf]
        %v629 = vld [vmem:[%s590 + $0x94] sm:$0xf]
        %v630 = vld [vmem:[%s590 + $0x98] sm:$0xf]
        %v631 = vld [vmem:[%s590 + $0x9c] sm:$0xf]
        %v632 = vld [vmem:[%s590 + $0xa0] sm:$0xf]
        %v633 = vld [vmem:[%s590 + $0xa4] sm:$0xf]
        %v634 = vld [vmem:[%s590 + $0xa8] sm:$0xf]
        %v635 = vld [vmem:[%s590 + $0xac] sm:$0xf]
        %v636 = vld [vmem:[%s590 + $0xb0] sm:$0xf]
        %v637 = vld [vmem:[%s590 + $0xb4] sm:$0xf]
        %v638 = vld [vmem:[%s590 + $0xb8] sm:$0xf]
        %v639 = vld [vmem:[%s590 + $0xbc] sm:$0xf]
        %v640 = vld [vmem:[%s590 + $0xc0] sm:$0xf]
        %v641 = vld [vmem:[%s590 + $0xc4] sm:$0xf]
        %v642 = vld [vmem:[%s590 + $0xc8] sm:$0xf]
        %v643 = vld [vmem:[%s590 + $0xcc] sm:$0xf]
        %v644 = vld [vmem:[%s590 + $0xd0] sm:$0xf]
        %v645 = vld [vmem:[%s590 + $0xd4] sm:$0xf]
        %v646 = vld [vmem:[%s590 + $0xd8] sm:$0xf]
        %v647 = vld [vmem:[%s590 + $0xdc] sm:$0xf]
        %v648 = vld [vmem:[%s590 + $0xe0] sm:$0xf]
        %v649 = vld [vmem:[%s590 + $0xe4] sm:$0xf]
        %v650 = vld [vmem:[%s590 + $0xe8] sm:$0xf]
        %v651 = vld [vmem:[%s590 + $0xec] sm:$0xf]
        %v652 = vld [vmem:[%s590 + $0xf0] sm:$0xf]
        %v653 = vld [vmem:[%s590 + $0xf4] sm:$0xf]
        %v654 = vld [vmem:[%s590 + $0xf8] sm:$0xf]
        %v655 = vld [vmem:[%s590 + $0xfc] sm:$0xf]
        %v656 = vld [vmem:[%s1] sm:$0xf]
        %v657 = vld [vmem:[%s1 + $0x4] sm:$0xf]
        %v658 = vld [vmem:[%s1 + $0x8] sm:$0xf]
        %v659 = vld [vmem:[%s1 + $0xc] sm:$0xf]
        %v660 = vld [vmem:[%s1 + $0x10] sm:$0xf]
        %v661 = vld [vmem:[%s1 + $0x14] sm:$0xf]
        %v662 = vld [vmem:[%s1 + $0x18] sm:$0xf]
        %v663 = vld [vmem:[%s1 + $0x1c] sm:$0xf]
        %v666 = vunpack.c.l.b16 %v656
        %v667 = vunpack.c.l.b16 %v657
        %v668 = vpack.c.b16 %v667, %v666
        %v685 = vunpack.c.l.b16 %v592
        %v686 = vunpack.c.l.b16 %v593
        %v687 = vunpack.c.l.b16 %v594
        %v688 = vunpack.c.l.b16 %v595
        %v689 = vunpack.c.l.b16 %v596
        %v690 = vunpack.c.l.b16 %v597
        %v691 = vunpack.c.l.b16 %v598
        %v692 = vunpack.c.l.b16 %v599
        %v693 = vunpack.c.l.b16 %v600
        %v694 = vunpack.c.l.b16 %v601
        %v695 = vunpack.c.l.b16 %v602
        %v696 = vunpack.c.l.b16 %v603
        %v697 = vunpack.c.l.b16 %v604
        %v698 = vunpack.c.l.b16 %v605
        %v699 = vunpack.c.l.b16 %v606
        %v700 = vunpack.c.l.b16 %v607
        %v701 = vpack.c.b16 %v686, %v685
        %v702 = vpack.c.b16 %v688, %v687
        %v703 = vpack.c.b16 %v690, %v689
        %v704 = vpack.c.b16 %v692, %v691
        %v705 = vpack.c.b16 %v694, %v693
        %v706 = vpack.c.b16 %v696, %v695
        %v707 = vpack.c.b16 %v698, %v697
        %v708 = vpack.c.b16 %v700, %v699
        %vm709 = vcmask 130048
        %v711 = vsel %vm709, %v668, 0
        %v714 = vsel %vm709, %v701, 0
        %v717 = vsel %vm709, %v702, 0
        %v720 = vsel %vm709, %v703, 0
        %v723 = vsel %vm709, %v704, 0
        %v726 = vsel %vm709, %v705, 0
        %v729 = vsel %vm709, %v706, 0
        %v732 = vsel %vm709, %v707, 0
        %v735 = vsel %vm709, %v708, 0
        %737 = vmatprep.subr.bf16.mxu0 0
        %738 = vmatpush1.bf16.xpose.msra.mxu0 %v714
        %739 = vmatprep.subr.bf16.mxu0 0
        %740 = vmatpush1.bf16.xpose.msra.mxu0 %v717
        %741 = vmatprep.subr.bf16.mxu0 0
        %742 = vmatpush1.bf16.xpose.msra.mxu0 %v720
        %743 = vmatprep.subr.bf16.mxu0 0
        %744 = vmatpush1.bf16.xpose.msra.mxu0 %v723
        %745 = vmatprep.subr.bf16.mxu0 0
        %746 = vmatpush1.bf16.xpose.msra.mxu0 %v726
        %747 = vmatprep.subr.bf16.mxu0 0
        %748 = vmatpush1.bf16.xpose.msra.mxu0 %v729
        %749 = vmatprep.subr.bf16.mxu0 0
        %750 = vmatpush1.bf16.xpose.msra.mxu0 %v732
        %751 = vmatprep.subr.bf16.mxu0 0
        %752 = vmatpush1.bf16.xpose.msra.mxu0 %v735
        %753 = vmatprep.subr.bf16.mxu0 0
        %754 = vmatpush1.bf16.xpose.msra.mxu0 0
        %755 = vmatprep.subr.bf16.mxu0 0
        %756 = vmatpush1.bf16.xpose.msra.mxu0 0
        %757 = vmatprep.subr.bf16.mxu0 0
        %758 = vmatpush1.bf16.xpose.msra.mxu0 0
        %759 = vmatprep.subr.bf16.mxu0 0
        %760 = vmatpush1.bf16.xpose.msra.mxu0 0
        %761 = vmatprep.subr.bf16.mxu0 0
        %762 = vmatpush1.bf16.xpose.msra.mxu0 0
        %763 = vmatprep.subr.bf16.mxu0 0
        %764 = vmatpush1.bf16.xpose.msra.mxu0 0
        %765 = vmatprep.subr.bf16.mxu0 0
        %766 = vmatpush1.bf16.xpose.msra.mxu0 0
        %767 = vmatprep.subr.bf16.mxu0 0
        %768 = vmatpush1.bf16.xpose.msra.mxu0 0
        %769 = vmatprep.mubr.bf16.mxu0 0
        %770 = vmatmul.mubr.bf16.gmra.mrb[0].mxu0 %v711
        %v771 = vpop.f32.mrb[0].mxu0
        %v772 = vadd.f32 0.0, %v771
        %v773 = vpop.f32.mrb[0].mxu0
        %v774 = vpop.f32.mrb[0].mxu0
        %v775 = vadd.f32 0.0, %v774
        %v776 = vpop.f32.mrb[0].mxu0
        %777 = vdwg.mxu0
        %v780 = vunpack.c.l.b16 %v658
        %v781 = vunpack.c.l.b16 %v659
        %v782 = vpack.c.b16 %v781, %v780
        %v799 = vunpack.c.l.b16 %v608
        %v800 = vunpack.c.l.b16 %v609
        %v801 = vunpack.c.l.b16 %v610
        %v802 = vunpack.c.l.b16 %v611
        %v803 = vunpack.c.l.b16 %v612
        %v804 = vunpack.c.l.b16 %v613
        %v805 = vunpack.c.l.b16 %v614
        %v806 = vunpack.c.l.b16 %v615
        %v807 = vunpack.c.l.b16 %v616
        %v808 = vunpack.c.l.b16 %v617
        %v809 = vunpack.c.l.b16 %v618
        %v810 = vunpack.c.l.b16 %v619
        %v811 = vunpack.c.l.b16 %v620
        %v812 = vunpack.c.l.b16 %v621
        %v813 = vunpack.c.l.b16 %v622
        %v814 = vunpack.c.l.b16 %v623
        %v815 = vpack.c.b16 %v800, %v799
        %v816 = vpack.c.b16 %v802, %v801
        %v817 = vpack.c.b16 %v804, %v803
        %v818 = vpack.c.b16 %v806, %v805
        %v819 = vpack.c.b16 %v808, %v807
        %v820 = vpack.c.b16 %v810, %v809
        %v821 = vpack.c.b16 %v812, %v811
        %v822 = vpack.c.b16 %v814, %v813
        %v824 = vsel %vm709, %v782, 0
        %v827 = vsel %vm709, %v815, 0
        %v830 = vsel %vm709, %v816, 0
        %v833 = vsel %vm709, %v817, 0
        %v836 = vsel %vm709, %v818, 0
        %v839 = vsel %vm709, %v819, 0
        %v842 = vsel %vm709, %v820, 0
        %v845 = vsel %vm709, %v821, 0
        %v848 = vsel %vm709, %v822, 0
        %850 = vmatprep.subr.bf16.mxu0 0
        %851 = vmatpush1.bf16.xpose.msra.mxu0 %v827
        %852 = vmatprep.subr.bf16.mxu0 0
        %853 = vmatpush1.bf16.xpose.msra.mxu0 %v830
        %854 = vmatprep.subr.bf16.mxu0 0
        %855 = vmatpush1.bf16.xpose.msra.mxu0 %v833
        %856 = vmatprep.subr.bf16.mxu0 0
        %857 = vmatpush1.bf16.xpose.msra.mxu0 %v836
        %858 = vmatprep.subr.bf16.mxu0 0
        %859 = vmatpush1.bf16.xpose.msra.mxu0 %v839
        %860 = vmatprep.subr.bf16.mxu0 0
        %861 = vmatpush1.bf16.xpose.msra.mxu0 %v842
        %862 = vmatprep.subr.bf16.mxu0 0
        %863 = vmatpush1.bf16.xpose.msra.mxu0 %v845
        %864 = vmatprep.subr.bf16.mxu0 0
        %865 = vmatpush1.bf16.xpose.msra.mxu0 %v848
        %866 = vmatprep.subr.bf16.mxu0 0
        %867 = vmatpush1.bf16.xpose.msra.mxu0 0
        %868 = vmatprep.subr.bf16.mxu0 0
        %869 = vmatpush1.bf16.xpose.msra.mxu0 0
        %870 = vmatprep.subr.bf16.mxu0 0
        %871 = vmatpush1.bf16.xpose.msra.mxu0 0
        %872 = vmatprep.subr.bf16.mxu0 0
        %873 = vmatpush1.bf16.xpose.msra.mxu0 0
        %874 = vmatprep.subr.bf16.mxu0 0
        %875 = vmatpush1.bf16.xpose.msra.mxu0 0
        %876 = vmatprep.subr.bf16.mxu0 0
        %877 = vmatpush1.bf16.xpose.msra.mxu0 0
        %878 = vmatprep.subr.bf16.mxu0 0
        %879 = vmatpush1.bf16.xpose.msra.mxu0 0
        %880 = vmatprep.subr.bf16.mxu0 0
        %881 = vmatpush1.bf16.xpose.msra.mxu0 0
        %882 = vmatprep.mubr.bf16.mxu0 0
        %883 = vmatmul.mubr.bf16.gmra.mrb[0].mxu0 %v824
        %v884 = vpop.f32.mrb[0].mxu0
        %v885 = vadd.f32 0.0, %v884
        %v886 = vpop.f32.mrb[0].mxu0
        %v887 = vpop.f32.mrb[0].mxu0
        %v888 = vadd.f32 0.0, %v887
        %v889 = vpop.f32.mrb[0].mxu0
        %890 = vdwg.mxu0
        %v893 = vunpack.c.l.b16 %v660
        %v894 = vunpack.c.l.b16 %v661
        %v895 = vpack.c.b16 %v894, %v893
        %v912 = vunpack.c.l.b16 %v624
        %v913 = vunpack.c.l.b16 %v625
        %v914 = vunpack.c.l.b16 %v626
        %v915 = vunpack.c.l.b16 %v627
        %v916 = vunpack.c.l.b16 %v628
        %v917 = vunpack.c.l.b16 %v629
        %v918 = vunpack.c.l.b16 %v630
        %v919 = vunpack.c.l.b16 %v631
        %v920 = vunpack.c.l.b16 %v632
        %v921 = vunpack.c.l.b16 %v633
        %v922 = vunpack.c.l.b16 %v634
        %v923 = vunpack.c.l.b16 %v635
        %v924 = vunpack.c.l.b16 %v636
        %v925 = vunpack.c.l.b16 %v637
        %v926 = vunpack.c.l.b16 %v638
        %v927 = vunpack.c.l.b16 %v639
        %v928 = vpack.c.b16 %v913, %v912
        %v929 = vpack.c.b16 %v915, %v914
        %v930 = vpack.c.b16 %v917, %v916
        %v931 = vpack.c.b16 %v919, %v918
        %v932 = vpack.c.b16 %v921, %v920
        %v933 = vpack.c.b16 %v923, %v922
        %v934 = vpack.c.b16 %v925, %v924
        %v935 = vpack.c.b16 %v927, %v926
        %v937 = vsel %vm709, %v895, 0
        %v940 = vsel %vm709, %v928, 0
        %v943 = vsel %vm709, %v929, 0
        %v946 = vsel %vm709, %v930, 0
        %v949 = vsel %vm709, %v931, 0
        %v952 = vsel %vm709, %v932, 0
        %v955 = vsel %vm709, %v933, 0
        %v958 = vsel %vm709, %v934, 0
        %v961 = vsel %vm709, %v935, 0
        %963 = vmatprep.subr.bf16.mxu0 0
        %964 = vmatpush1.bf16.xpose.msra.mxu0 %v940
        %965 = vmatprep.subr.bf16.mxu0 0
        %966 = vmatpush1.bf16.xpose.msra.mxu0 %v943
        %967 = vmatprep.subr.bf16.mxu0 0
        %968 = vmatpush1.bf16.xpose.msra.mxu0 %v946
        %969 = vmatprep.subr.bf16.mxu0 0
        %970 = vmatpush1.bf16.xpose.msra.mxu0 %v949
        %971 = vmatprep.subr.bf16.mxu0 0
        %972 = vmatpush1.bf16.xpose.msra.mxu0 %v952
        %973 = vmatprep.subr.bf16.mxu0 0
        %974 = vmatpush1.bf16.xpose.msra.mxu0 %v955
        %975 = vmatprep.subr.bf16.mxu0 0
        %976 = vmatpush1.bf16.xpose.msra.mxu0 %v958
        %977 = vmatprep.subr.bf16.mxu0 0
        %978 = vmatpush1.bf16.xpose.msra.mxu0 %v961
        %979 = vmatprep.subr.bf16.mxu0 0
        %980 = vmatpush1.bf16.xpose.msra.mxu0 0
        %981 = vmatprep.subr.bf16.mxu0 0
        %982 = vmatpush1.bf16.xpose.msra.mxu0 0
        %983 = vmatprep.subr.bf16.mxu0 0
        %984 = vmatpush1.bf16.xpose.msra.mxu0 0
        %985 = vmatprep.subr.bf16.mxu0 0
        %986 = vmatpush1.bf16.xpose.msra.mxu0 0
        %987 = vmatprep.subr.bf16.mxu0 0
        %988 = vmatpush1.bf16.xpose.msra.mxu0 0
        %989 = vmatprep.subr.bf16.mxu0 0
        %990 = vmatpush1.bf16.xpose.msra.mxu0 0
        %991 = vmatprep.subr.bf16.mxu0 0
        %992 = vmatpush1.bf16.xpose.msra.mxu0 0
        %993 = vmatprep.subr.bf16.mxu0 0
        %994 = vmatpush1.bf16.xpose.msra.mxu0 0
        %995 = vmatprep.mubr.bf16.mxu0 0
        %996 = vmatmul.mubr.bf16.gmra.mrb[0].mxu0 %v937
        %v997 = vpop.f32.mrb[0].mxu0
        %v998 = vadd.f32 0.0, %v997
        %v999 = vpop.f32.mrb[0].mxu0
        %v1000 = vpop.f32.mrb[0].mxu0
        %v1001 = vadd.f32 0.0, %v1000
        %v1002 = vpop.f32.mrb[0].mxu0
        %1003 = vdwg.mxu0
        %v1006 = vunpack.c.l.b16 %v662
        %v1007 = vunpack.c.l.b16 %v663
        %v1008 = vpack.c.b16 %v1007, %v1006
        %v1025 = vunpack.c.l.b16 %v640
        %v1026 = vunpack.c.l.b16 %v641
        %v1027 = vunpack.c.l.b16 %v642
        %v1028 = vunpack.c.l.b16 %v643
        %v1029 = vunpack.c.l.b16 %v644
        %v1030 = vunpack.c.l.b16 %v645
        %v1031 = vunpack.c.l.b16 %v646
        %v1032 = vunpack.c.l.b16 %v647
        %v1033 = vunpack.c.l.b16 %v648
        %v1034 = vunpack.c.l.b16 %v649
        %v1035 = vunpack.c.l.b16 %v650
        %v1036 = vunpack.c.l.b16 %v651
        %v1037 = vunpack.c.l.b16 %v652
        %v1038 = vunpack.c.l.b16 %v653
        %v1039 = vunpack.c.l.b16 %v654
        %v1040 = vunpack.c.l.b16 %v655
        %v1041 = vpack.c.b16 %v1026, %v1025
        %v1042 = vpack.c.b16 %v1028, %v1027
        %v1043 = vpack.c.b16 %v1030, %v1029
        %v1044 = vpack.c.b16 %v1032, %v1031
        %v1045 = vpack.c.b16 %v1034, %v1033
        %v1046 = vpack.c.b16 %v1036, %v1035
        %v1047 = vpack.c.b16 %v1038, %v1037
        %v1048 = vpack.c.b16 %v1040, %v1039
        %v1050 = vsel %vm709, %v1008, 0
        %v1053 = vsel %vm709, %v1041, 0
        %v1056 = vsel %vm709, %v1042, 0
        %v1059 = vsel %vm709, %v1043, 0
        %v1062 = vsel %vm709, %v1044, 0
        %v1065 = vsel %vm709, %v1045, 0
        %v1068 = vsel %vm709, %v1046, 0
        %v1071 = vsel %vm709, %v1047, 0
        %v1074 = vsel %vm709, %v1048, 0
        %1076 = vmatprep.subr.bf16.mxu0 0
        %1077 = vmatpush1.bf16.xpose.msra.mxu0 %v1053
        %1078 = vmatprep.subr.bf16.mxu0 0
        %1079 = vmatpush1.bf16.xpose.msra.mxu0 %v1056
        %1080 = vmatprep.subr.bf16.mxu0 0
        %1081 = vmatpush1.bf16.xpose.msra.mxu0 %v1059
        %1082 = vmatprep.subr.bf16.mxu0 0
        %1083 = vmatpush1.bf16.xpose.msra.mxu0 %v1062
        %1084 = vmatprep.subr.bf16.mxu0 0
        %1085 = vmatpush1.bf16.xpose.msra.mxu0 %v1065
        %1086 = vmatprep.subr.bf16.mxu0 0
        %1087 = vmatpush1.bf16.xpose.msra.mxu0 %v1068
        %1088 = vmatprep.subr.bf16.mxu0 0
        %1089 = vmatpush1.bf16.xpose.msra.mxu0 %v1071
        %1090 = vmatprep.subr.bf16.mxu0 0
        %1091 = vmatpush1.bf16.xpose.msra.mxu0 %v1074
        %1092 = vmatprep.subr.bf16.mxu0 0
        %1093 = vmatpush1.bf16.xpose.msra.mxu0 0
        %1094 = vmatprep.subr.bf16.mxu0 0
        %1095 = vmatpush1.bf16.xpose.msra.mxu0 0
        %1096 = vmatprep.subr.bf16.mxu0 0
        %1097 = vmatpush1.bf16.xpose.msra.mxu0 0
        %1098 = vmatprep.subr.bf16.mxu0 0
        %1099 = vmatpush1.bf16.xpose.msra.mxu0 0
        %1100 = vmatprep.subr.bf16.mxu0 0
        %1101 = vmatpush1.bf16.xpose.msra.mxu0 0
        %1102 = vmatprep.subr.bf16.mxu0 0
        %1103 = vmatpush1.bf16.xpose.msra.mxu0 0
        %1104 = vmatprep.subr.bf16.mxu0 0
        %1105 = vmatpush1.bf16.xpose.msra.mxu0 0
        %1106 = vmatprep.subr.bf16.mxu0 0
        %1107 = vmatpush1.bf16.xpose.msra.mxu0 0
        %1108 = vmatprep.mubr.bf16.mxu0 0
        %1109 = vmatmul.mubr.bf16.gmra.mrb[0].mxu0 %v1050
        %v1110 = vpop.f32.mrb[0].mxu0
        %v1111 = vadd.f32 0.0, %v1110
        %v1112 = vpop.f32.mrb[0].mxu0
        %v1113 = vpop.f32.mrb[0].mxu0
        %v1114 = vadd.f32 0.0, %v1113
        %v1115 = vpop.f32.mrb[0].mxu0
        %1116 = vdwg.mxu0
        %v1117 = vld [vmem:[%s2] sm:$0x1]
        %v1118 = vld [vmem:[%s2 + $0x1] sm:$0x1]
        %v1119 = vld [vmem:[%s2 + $0x2] sm:$0x1]
        %v1120 = vld [vmem:[%s2 + $0x3] sm:$0x1]
        %v1122 = vsel %vm709, %v1117, 0
        %1124 = vmatprep.subr.bf16.mxu0 0
        %1125 = vmatpush1.bf16.xpose.msra.mxu0 %v714
        %1126 = vmatprep.subr.bf16.mxu0 0
        %1127 = vmatpush1.bf16.xpose.msra.mxu0 %v717
        %1128 = vmatprep.subr.bf16.mxu0 0
        %1129 = vmatpush1.bf16.xpose.msra.mxu0 %v720
        %1130 = vmatprep.subr.bf16.mxu0 0
        %1131 = vmatpush1.bf16.xpose.msra.mxu0 %v723
        %1132 = vmatprep.subr.bf16.mxu0 0
        %1133 = vmatpush1.bf16.xpose.msra.mxu0 %v726
        %1134 = vmatprep.subr.bf16.mxu0 0
        %1135 = vmatpush1.bf16.xpose.msra.mxu0 %v729
        %1136 = vmatprep.subr.bf16.mxu0 0
        %1137 = vmatpush1.bf16.xpose.msra.mxu0 %v732
        %1138 = vmatprep.subr.bf16.mxu0 0
        %1139 = vmatpush1.bf16.xpose.msra.mxu0 %v735
        %1140 = vmatprep.subr.bf16.mxu0 0
        %1141 = vmatpush1.bf16.xpose.msra.mxu0 0
        %1142 = vmatprep.subr.bf16.mxu0 0
        %1143 = vmatpush1.bf16.xpose.msra.mxu0 0
        %1144 = vmatprep.subr.bf16.mxu0 0
        %1145 = vmatpush1.bf16.xpose.msra.mxu0 0
        %1146 = vmatprep.subr.bf16.mxu0 0
        %1147 = vmatpush1.bf16.xpose.msra.mxu0 0
        %1148 = vmatprep.subr.bf16.mxu0 0
        %1149 = vmatpush1.bf16.xpose.msra.mxu0 0
        %1150 = vmatprep.subr.bf16.mxu0 0
        %1151 = vmatpush1.bf16.xpose.msra.mxu0 0
        %1152 = vmatprep.subr.bf16.mxu0 0
        %1153 = vmatpush1.bf16.xpose.msra.mxu0 0
        %1154 = vmatprep.subr.bf16.mxu0 0
        %1155 = vmatpush1.bf16.xpose.msra.mxu0 0
        %1156 = vmatprep.mubr.bf16.mxu0 0
        %1157 = vmatmul.mubr.bf16.gmra.mrb[0].mxu0 %v1122
        %v1158 = vpop.f32.mrb[0].mxu0
        %v1159 = vadd.f32 0.0, %v1158
        %v1160 = vpop.f32.mrb[0].mxu0
        %v1161 = vpop.f32.mrb[0].mxu0
        %v1162 = vpop.f32.mrb[0].mxu0
        %1163 = vdwg.mxu0
        %v1165 = vsel %vm709, %v1118, 0
        %1167 = vmatprep.subr.bf16.mxu0 0
        %1168 = vmatpush1.bf16.xpose.msra.mxu0 %v827
        %1169 = vmatprep.subr.bf16.mxu0 0
        %1170 = vmatpush1.bf16.xpose.msra.mxu0 %v830
        %1171 = vmatprep.subr.bf16.mxu0 0
        %1172 = vmatpush1.bf16.xpose.msra.mxu0 %v833
        %1173 = vmatprep.subr.bf16.mxu0 0
        %1174 = vmatpush1.bf16.xpose.msra.mxu0 %v836
        %1175 = vmatprep.subr.bf16.mxu0 0
        %1176 = vmatpush1.bf16.xpose.msra.mxu0 %v839
        %1177 = vmatprep.subr.bf16.mxu0 0
        %1178 = vmatpush1.bf16.xpose.msra.mxu0 %v842
        %1179 = vmatprep.subr.bf16.mxu0 0
        %1180 = vmatpush1.bf16.xpose.msra.mxu0 %v845
        %1181 = vmatprep.subr.bf16.mxu0 0
        %1182 = vmatpush1.bf16.xpose.msra.mxu0 %v848
        %1183 = vmatprep.subr.bf16.mxu0 0
        %1184 = vmatpush1.bf16.xpose.msra.mxu0 0
        %1185 = vmatprep.subr.bf16.mxu0 0
        %1186 = vmatpush1.bf16.xpose.msra.mxu0 0
        %1187 = vmatprep.subr.bf16.mxu0 0
        %1188 = vmatpush1.bf16.xpose.msra.mxu0 0
        %1189 = vmatprep.subr.bf16.mxu0 0
        %1190 = vmatpush1.bf16.xpose.msra.mxu0 0
        %1191 = vmatprep.subr.bf16.mxu0 0
        %1192 = vmatpush1.bf16.xpose.msra.mxu0 0
        %1193 = vmatprep.subr.bf16.mxu0 0
        %1194 = vmatpush1.bf16.xpose.msra.mxu0 0
        %1195 = vmatprep.subr.bf16.mxu0 0
        %1196 = vmatpush1.bf16.xpose.msra.mxu0 0
        %1197 = vmatprep.subr.bf16.mxu0 0
        %1198 = vmatpush1.bf16.xpose.msra.mxu0 0
        %1199 = vmatprep.mubr.bf16.mxu0 0
        %1200 = vmatmul.mubr.bf16.gmra.mrb[0].mxu0 %v1165
        %v1201 = vpop.f32.mrb[0].mxu0
        %v1202 = vadd.f32 0.0, %v1201
        %v1203 = vpop.f32.mrb[0].mxu0
        %v1204 = vpop.f32.mrb[0].mxu0
        %v1205 = vpop.f32.mrb[0].mxu0
        %1206 = vdwg.mxu0
        %v1208 = vsel %vm709, %v1119, 0
        %1210 = vmatprep.subr.bf16.mxu0 0
        %1211 = vmatpush1.bf16.xpose.msra.mxu0 %v940
        %1212 = vmatprep.subr.bf16.mxu0 0
        %1213 = vmatpush1.bf16.xpose.msra.mxu0 %v943
        %1214 = vmatprep.subr.bf16.mxu0 0
        %1215 = vmatpush1.bf16.xpose.msra.mxu0 %v946
        %1216 = vmatprep.subr.bf16.mxu0 0
        %1217 = vmatpush1.bf16.xpose.msra.mxu0 %v949
        %1218 = vmatprep.subr.bf16.mxu0 0
        %1219 = vmatpush1.bf16.xpose.msra.mxu0 %v952
        %1220 = vmatprep.subr.bf16.mxu0 0
        %1221 = vmatpush1.bf16.xpose.msra.mxu0 %v955
        %1222 = vmatprep.subr.bf16.mxu0 0
        %1223 = vmatpush1.bf16.xpose.msra.mxu0 %v958
        %1224 = vmatprep.subr.bf16.mxu0 0
        %1225 = vmatpush1.bf16.xpose.msra.mxu0 %v961
        %1226 = vmatprep.subr.bf16.mxu0 0
        %1227 = vmatpush1.bf16.xpose.msra.mxu0 0
        %1228 = vmatprep.subr.bf16.mxu0 0
        %1229 = vmatpush1.bf16.xpose.msra.mxu0 0
        %1230 = vmatprep.subr.bf16.mxu0 0
        %1231 = vmatpush1.bf16.xpose.msra.mxu0 0
        %1232 = vmatprep.subr.bf16.mxu0 0
        %1233 = vmatpush1.bf16.xpose.msra.mxu0 0
        %1234 = vmatprep.subr.bf16.mxu0 0
        %1235 = vmatpush1.bf16.xpose.msra.mxu0 0
        %1236 = vmatprep.subr.bf16.mxu0 0
        %1237 = vmatpush1.bf16.xpose.msra.mxu0 0
        %1238 = vmatprep.subr.bf16.mxu0 0
        %1239 = vmatpush1.bf16.xpose.msra.mxu0 0
        %1240 = vmatprep.subr.bf16.mxu0 0
        %1241 = vmatpush1.bf16.xpose.msra.mxu0 0
        %1242 = vmatprep.mubr.bf16.mxu0 0
        %1243 = vmatmul.mubr.bf16.gmra.mrb[0].mxu0 %v1208
        %v1244 = vpop.f32.mrb[0].mxu0
        %v1245 = vadd.f32 0.0, %v1244
        %v1246 = vpop.f32.mrb[0].mxu0
        %v1247 = vpop.f32.mrb[0].mxu0
        %v1248 = vpop.f32.mrb[0].mxu0
        %1249 = vdwg.mxu0
        %v1251 = vsel %vm709, %v1120, 0
        %1253 = vmatprep.subr.bf16.mxu0 0
        %1254 = vmatpush1.bf16.xpose.msra.mxu0 %v1053
        %1255 = vmatprep.subr.bf16.mxu0 0
        %1256 = vmatpush1.bf16.xpose.msra.mxu0 %v1056
        %1257 = vmatprep.subr.bf16.mxu0 0
        %1258 = vmatpush1.bf16.xpose.msra.mxu0 %v1059
        %1259 = vmatprep.subr.bf16.mxu0 0
        %1260 = vmatpush1.bf16.xpose.msra.mxu0 %v1062
        %1261 = vmatprep.subr.bf16.mxu0 0
        %1262 = vmatpush1.bf16.xpose.msra.mxu0 %v1065
        %1263 = vmatprep.subr.bf16.mxu0 0
        %1264 = vmatpush1.bf16.xpose.msra.mxu0 %v1068
        %1265 = vmatprep.subr.bf16.mxu0 0
        %1266 = vmatpush1.bf16.xpose.msra.mxu0 %v1071
        %1267 = vmatprep.subr.bf16.mxu0 0
        %1268 = vmatpush1.bf16.xpose.msra.mxu0 %v1074
        %1269 = vmatprep.subr.bf16.mxu0 0
        %1270 = vmatpush1.bf16.xpose.msra.mxu0 0
        %1271 = vmatprep.subr.bf16.mxu0 0
        %1272 = vmatpush1.bf16.xpose.msra.mxu0 0
        %1273 = vmatprep.subr.bf16.mxu0 0
        %1274 = vmatpush1.bf16.xpose.msra.mxu0 0
        %1275 = vmatprep.subr.bf16.mxu0 0
        %1276 = vmatpush1.bf16.xpose.msra.mxu0 0
        %1277 = vmatprep.subr.bf16.mxu0 0
        %1278 = vmatpush1.bf16.xpose.msra.mxu0 0
        %1279 = vmatprep.subr.bf16.mxu0 0
        %1280 = vmatpush1.bf16.xpose.msra.mxu0 0
        %1281 = vmatprep.subr.bf16.mxu0 0
        %1282 = vmatpush1.bf16.xpose.msra.mxu0 0
        %1283 = vmatprep.subr.bf16.mxu0 0
        %1284 = vmatpush1.bf16.xpose.msra.mxu0 0
        %1285 = vmatprep.mubr.bf16.mxu0 0
        %1286 = vmatmul.mubr.bf16.gmra.mrb[0].mxu0 %v1251
        %v1287 = vpop.f32.mrb[0].mxu0
        %v1288 = vadd.f32 0.0, %v1287
        %v1289 = vpop.f32.mrb[0].mxu0
        %v1290 = vpop.f32.mrb[0].mxu0
        %v1291 = vpop.f32.mrb[0].mxu0
        %1292 = vdwg.mxu0
        %vm1293 = vcmask 1040384
        %v1294 = vsel %vm1293, %v1159, 0.0
        %v1295 = vsel %vm1293, %v1202, 0.0
        %v1296 = vadd.f32 %v1294, %v1295
        %v1297 = vsel %vm1293, %v1245, 0.0
        %v1298 = vadd.f32 %v1296, %v1297
        %v1299 = vsel %vm1293, %v1288, 0.0
        %v1300 = vadd.f32 %v1298, %v1299
        %1301 = vst [vmem:[%s578] sm:$0x1] %v1300
        %v1302 = vmul.f32 %v772, 0.25
        %v1303 = vmul.f32 %v775, 0.25
        %v1304 = vmul.f32 %v885, 0.25
        %v1305 = vmul.f32 %v888, 0.25
        %v1306 = vmul.f32 %v998, 0.25
        %v1307 = vmul.f32 %v1001, 0.25
        %v1308 = vmul.f32 %v1111, 0.25
        %v1309 = vmul.f32 %v1114, 0.25
        %v1310 = vld [vmem:[%s3] sm:$0x1]
        %v1312 = vlaneseq
        %v1313 = vshrl.u32 %v1312, 7
        %v1314 = vsub.s32 0, %v1313
        %v1315 = vrot.slane %v1310, %v1314
        %v1317 = vadd.f32 %v1302, %v1315
        %v1318 = vadd.f32 %v1303, %v1315
        %v1319 = vadd.f32 %v1304, %v1315
        %v1320 = vadd.f32 %v1305, %v1315
        %v1321 = vadd.f32 %v1306, %v1315
        %v1322 = vadd.f32 %v1307, %v1315
        %v1323 = vadd.f32 %v1308, %v1315
        %v1324 = vadd.f32 %v1309, %v1315
        %1325 = vmax.xlane.f32.xlu0 %v1317
        %v1326 = vpop.xlane.xlu0 %1325
        %1327 = vmax.xlane.f32.xlu0 %v1318
        %v1328 = vpop.xlane.xlu0 %1327
        %1329 = vmax.xlane.f32.xlu0 %v1319
        %v1330 = vpop.xlane.xlu0 %1329
        %1331 = vmax.xlane.f32.xlu0 %v1320
        %v1332 = vpop.xlane.xlu0 %1331
        %1333 = vmax.xlane.f32.xlu0 %v1321
        %v1334 = vpop.xlane.xlu0 %1333
        %1335 = vmax.xlane.f32.xlu0 %v1322
        %v1336 = vpop.xlane.xlu0 %1335
        %1337 = vmax.xlane.f32.xlu0 %v1323
        %v1338 = vpop.xlane.xlu0 %1337
        %1339 = vmax.xlane.f32.xlu0 %v1324
        %v1340 = vpop.xlane.xlu0 %1339
        %v1341 = vsub.f32 %v1317, %v1326
        %v1342 = vsub.f32 %v1318, %v1328
        %v1343 = vsub.f32 %v1319, %v1330
        %v1344 = vsub.f32 %v1320, %v1332
        %v1345 = vsub.f32 %v1321, %v1334
        %v1346 = vsub.f32 %v1322, %v1336
        %v1347 = vsub.f32 %v1323, %v1338
        %v1348 = vsub.f32 %v1324, %v1340
        %v1349 = vmul.f32 %v1341, 1.442695
        %v1350 = vpow.pop %v1349
        %v1351 = vmul.f32 %v1342, 1.442695
        %v1352 = vpow.pop %v1351
        %v1353 = vmul.f32 %v1343, 1.442695
        %v1354 = vpow.pop %v1353
        %v1355 = vmul.f32 %v1344, 1.442695
        %v1356 = vpow.pop %v1355
        %v1357 = vmul.f32 %v1345, 1.442695
        %v1358 = vpow.pop %v1357
        %v1359 = vmul.f32 %v1346, 1.442695
        %v1360 = vpow.pop %v1359
        %v1361 = vmul.f32 %v1347, 1.442695
        %v1362 = vpow.pop %v1361
        %v1363 = vmul.f32 %v1348, 1.442695
        %v1364 = vpow.pop %v1363
        %1365 = vadd.xlane.f32.xlu0 %v1350
        %v1366 = vpop.xlane.xlu0 %1365
        %1367 = vadd.xlane.f32.xlu0 %v1352
        %v1368 = vpop.xlane.xlu0 %1367
        %1369 = vadd.xlane.f32.xlu0 %v1354
        %v1370 = vpop.xlane.xlu0 %1369
        %1371 = vadd.xlane.f32.xlu0 %v1356
        %v1372 = vpop.xlane.xlu0 %1371
        %1373 = vadd.xlane.f32.xlu0 %v1358
        %v1374 = vpop.xlane.xlu0 %1373
        %1375 = vadd.xlane.f32.xlu0 %v1360
        %v1376 = vpop.xlane.xlu0 %1375
        %1377 = vadd.xlane.f32.xlu0 %v1362
        %v1378 = vpop.xlane.xlu0 %1377
        %1379 = vadd.xlane.f32.xlu0 %v1364
        %v1380 = vpop.xlane.xlu0 %1379
        %v1381 = vrcp.pop %v1366
        %v1382 = vrcp.pop %v1368
        %v1383 = vrcp.pop %v1370
        %v1384 = vrcp.pop %v1372
        %v1385 = vrcp.pop %v1374
        %v1386 = vrcp.pop %v1376
        %v1387 = vrcp.pop %v1378
        %v1388 = vrcp.pop %v1380
        %v1389 = vmul.f32 %v1350, %v1381
        %v1390 = vmul.f32 %v1352, %v1382
        %v1391 = vmul.f32 %v1354, %v1383
        %v1392 = vmul.f32 %v1356, %v1384
        %v1393 = vmul.f32 %v1358, %v1385
        %v1394 = vmul.f32 %v1360, %v1386
        %v1395 = vmul.f32 %v1362, %v1387
        %v1396 = vmul.f32 %v1364, %v1388
        %v1397 = vpack.c.bf16 %v1390, %v1389
        %v1398 = vpack.c.bf16 %v1392, %v1391
        %v1399 = vpack.c.bf16 %v1394, %v1393
        %v1400 = vpack.c.bf16 %v1396, %v1395
        %1409 = vmatprep.subr.bf16.mxu0 0
        %1410 = vmatpush1.bf16.msra.mxu0 %v701
        %1411 = vmatprep.subr.bf16.mxu0 0
        %1412 = vmatpush1.bf16.msra.mxu0 %v702
        %1413 = vmatprep.subr.bf16.mxu0 0
        %1414 = vmatpush1.bf16.msra.mxu0 %v703
        %1415 = vmatprep.subr.bf16.mxu0 0
        %1416 = vmatpush1.bf16.msra.mxu0 %v704
        %1417 = vmatprep.subr.bf16.mxu0 0
        %1418 = vmatpush1.bf16.msra.mxu0 %v705
        %1419 = vmatprep.subr.bf16.mxu0 0
        %1420 = vmatpush1.bf16.msra.mxu0 %v706
        %1421 = vmatprep.subr.bf16.mxu0 0
        %1422 = vmatpush1.bf16.msra.mxu0 %v707
        %1423 = vmatprep.subr.bf16.mxu0 0
        %1424 = vmatpush1.bf16.msra.mxu0 %v708
        %1425 = vmatprep.subr.bf16.mxu0 0
        %1426 = vmatpush1.bf16.msra.mxu0 0
        %1427 = vmatprep.subr.bf16.mxu0 0
        %1428 = vmatpush1.bf16.msra.mxu0 0
        %1429 = vmatprep.subr.bf16.mxu0 0
        %1430 = vmatpush1.bf16.msra.mxu0 0
        %1431 = vmatprep.subr.bf16.mxu0 0
        %1432 = vmatpush1.bf16.msra.mxu0 0
        %1433 = vmatprep.subr.bf16.mxu0 0
        %1434 = vmatpush1.bf16.msra.mxu0 0
        %1435 = vmatprep.subr.bf16.mxu0 0
        %1436 = vmatpush1.bf16.msra.mxu0 0
        %1437 = vmatprep.subr.bf16.mxu0 0
        %1438 = vmatpush1.bf16.msra.mxu0 0
        %1439 = vmatprep.subr.bf16.mxu0 0
        %1440 = vmatpush1.bf16.msra.mxu0 0
        %1441 = vmatprep.mubr.bf16.mxu0 0
        %1442 = vmatmul.mubr.bf16.gmra.mrb[0].mxu0 %v1397
        %v1443 = vpop.f32.mrb[0].mxu0
        %v1444 = vadd.f32 0.0, %v1443
        %v1445 = vpop.f32.mrb[0].mxu0
        %v1446 = vpop.f32.mrb[0].mxu0
        %v1447 = vadd.f32 0.0, %v1446
        %v1448 = vpop.f32.mrb[0].mxu0
        %1449 = vdwg.mxu0
        %1458 = vmatprep.subr.bf16.mxu0 0
        %1459 = vmatpush1.bf16.msra.mxu0 %v815
        %1460 = vmatprep.subr.bf16.mxu0 0
        %1461 = vmatpush1.bf16.msra.mxu0 %v816
        %1462 = vmatprep.subr.bf16.mxu0 0
        %1463 = vmatpush1.bf16.msra.mxu0 %v817
        %1464 = vmatprep.subr.bf16.mxu0 0
        %1465 = vmatpush1.bf16.msra.mxu0 %v818
        %1466 = vmatprep.subr.bf16.mxu0 0
        %1467 = vmatpush1.bf16.msra.mxu0 %v819
        %1468 = vmatprep.subr.bf16.mxu0 0
        %1469 = vmatpush1.bf16.msra.mxu0 %v820
        %1470 = vmatprep.subr.bf16.mxu0 0
        %1471 = vmatpush1.bf16.msra.mxu0 %v821
        %1472 = vmatprep.subr.bf16.mxu0 0
        %1473 = vmatpush1.bf16.msra.mxu0 %v822
        %1474 = vmatprep.subr.bf16.mxu0 0
        %1475 = vmatpush1.bf16.msra.mxu0 0
        %1476 = vmatprep.subr.bf16.mxu0 0
        %1477 = vmatpush1.bf16.msra.mxu0 0
        %1478 = vmatprep.subr.bf16.mxu0 0
        %1479 = vmatpush1.bf16.msra.mxu0 0
        %1480 = vmatprep.subr.bf16.mxu0 0
        %1481 = vmatpush1.bf16.msra.mxu0 0
        %1482 = vmatprep.subr.bf16.mxu0 0
        %1483 = vmatpush1.bf16.msra.mxu0 0
        %1484 = vmatprep.subr.bf16.mxu0 0
        %1485 = vmatpush1.bf16.msra.mxu0 0
        %1486 = vmatprep.subr.bf16.mxu0 0
        %1487 = vmatpush1.bf16.msra.mxu0 0
        %1488 = vmatprep.subr.bf16.mxu0 0
        %1489 = vmatpush1.bf16.msra.mxu0 0
        %1490 = vmatprep.mubr.bf16.mxu0 0
        %1491 = vmatmul.mubr.bf16.gmra.mrb[0].mxu0 %v1398
        %v1492 = vpop.f32.mrb[0].mxu0
        %v1493 = vadd.f32 0.0, %v1492
        %v1494 = vpop.f32.mrb[0].mxu0
        %v1495 = vpop.f32.mrb[0].mxu0
        %v1496 = vadd.f32 0.0, %v1495
        %v1497 = vpop.f32.mrb[0].mxu0
        %1498 = vdwg.mxu0
        %1507 = vmatprep.subr.bf16.mxu0 0
        %1508 = vmatpush1.bf16.msra.mxu0 %v928
        %1509 = vmatprep.subr.bf16.mxu0 0
        %1510 = vmatpush1.bf16.msra.mxu0 %v929
        %1511 = vmatprep.subr.bf16.mxu0 0
        %1512 = vmatpush1.bf16.msra.mxu0 %v930
        %1513 = vmatprep.subr.bf16.mxu0 0
        %1514 = vmatpush1.bf16.msra.mxu0 %v931
        %1515 = vmatprep.subr.bf16.mxu0 0
        %1516 = vmatpush1.bf16.msra.mxu0 %v932
        %1517 = vmatprep.subr.bf16.mxu0 0
        %1518 = vmatpush1.bf16.msra.mxu0 %v933
        %1519 = vmatprep.subr.bf16.mxu0 0
        %1520 = vmatpush1.bf16.msra.mxu0 %v934
        %1521 = vmatprep.subr.bf16.mxu0 0
        %1522 = vmatpush1.bf16.msra.mxu0 %v935
        %1523 = vmatprep.subr.bf16.mxu0 0
        %1524 = vmatpush1.bf16.msra.mxu0 0
        %1525 = vmatprep.subr.bf16.mxu0 0
        %1526 = vmatpush1.bf16.msra.mxu0 0
        %1527 = vmatprep.subr.bf16.mxu0 0
        %1528 = vmatpush1.bf16.msra.mxu0 0
        %1529 = vmatprep.subr.bf16.mxu0 0
        %1530 = vmatpush1.bf16.msra.mxu0 0
        %1531 = vmatprep.subr.bf16.mxu0 0
        %1532 = vmatpush1.bf16.msra.mxu0 0
        %1533 = vmatprep.subr.bf16.mxu0 0
        %1534 = vmatpush1.bf16.msra.mxu0 0
        %1535 = vmatprep.subr.bf16.mxu0 0
        %1536 = vmatpush1.bf16.msra.mxu0 0
        %1537 = vmatprep.subr.bf16.mxu0 0
        %1538 = vmatpush1.bf16.msra.mxu0 0
        %1539 = vmatprep.mubr.bf16.mxu0 0
        %1540 = vmatmul.mubr.bf16.gmra.mrb[0].mxu0 %v1399
        %v1541 = vpop.f32.mrb[0].mxu0
        %v1542 = vadd.f32 0.0, %v1541
        %v1543 = vpop.f32.mrb[0].mxu0
        %v1544 = vpop.f32.mrb[0].mxu0
        %v1545 = vadd.f32 0.0, %v1544
        %v1546 = vpop.f32.mrb[0].mxu0
        %1547 = vdwg.mxu0
        %1556 = vmatprep.subr.bf16.mxu0 0
        %1557 = vmatpush1.bf16.msra.mxu0 %v1041
        %1558 = vmatprep.subr.bf16.mxu0 0
        %1559 = vmatpush1.bf16.msra.mxu0 %v1042
        %1560 = vmatprep.subr.bf16.mxu0 0
        %1561 = vmatpush1.bf16.msra.mxu0 %v1043
        %1562 = vmatprep.subr.bf16.mxu0 0
        %1563 = vmatpush1.bf16.msra.mxu0 %v1044
        %1564 = vmatprep.subr.bf16.mxu0 0
        %1565 = vmatpush1.bf16.msra.mxu0 %v1045
        %1566 = vmatprep.subr.bf16.mxu0 0
        %1567 = vmatpush1.bf16.msra.mxu0 %v1046
        %1568 = vmatprep.subr.bf16.mxu0 0
        %1569 = vmatpush1.bf16.msra.mxu0 %v1047
        %1570 = vmatprep.subr.bf16.mxu0 0
        %1571 = vmatpush1.bf16.msra.mxu0 %v1048
        %1572 = vmatprep.subr.bf16.mxu0 0
        %1573 = vmatpush1.bf16.msra.mxu0 0
        %1574 = vmatprep.subr.bf16.mxu0 0
        %1575 = vmatpush1.bf16.msra.mxu0 0
        %1576 = vmatprep.subr.bf16.mxu0 0
        %1577 = vmatpush1.bf16.msra.mxu0 0
        %1578 = vmatprep.subr.bf16.mxu0 0
        %1579 = vmatpush1.bf16.msra.mxu0 0
        %1580 = vmatprep.subr.bf16.mxu0 0
        %1581 = vmatpush1.bf16.msra.mxu0 0
        %1582 = vmatprep.subr.bf16.mxu0 0
        %1583 = vmatpush1.bf16.msra.mxu0 0
        %1584 = vmatprep.subr.bf16.mxu0 0
        %1585 = vmatpush1.bf16.msra.mxu0 0
        %1586 = vmatprep.subr.bf16.mxu0 0
        %1587 = vmatpush1.bf16.msra.mxu0 0
        %1588 = vmatprep.mubr.bf16.mxu0 0
        %1589 = vmatmul.mubr.bf16.gmra.mrb[0].mxu0 %v1400
        %v1590 = vpop.f32.mrb[0].mxu0
        %v1591 = vadd.f32 0.0, %v1590
        %v1592 = vpop.f32.mrb[0].mxu0
        %v1593 = vpop.f32.mrb[0].mxu0
        %v1594 = vadd.f32 0.0, %v1593
        %v1595 = vpop.f32.mrb[0].mxu0
        %1596 = vdwg.mxu0
        %v1597 = vpack.c.bf16 %v1447, %v1444
        %v1598 = vpack.c.bf16 %v1496, %v1493
        %v1599 = vpack.c.bf16 %v1545, %v1542
        %v1600 = vpack.c.bf16 %v1594, %v1591
        %v1601 = vld [vmem:[%s4] sm:$0xf]
        %v1602 = vld [vmem:[%s4 + $0x4] sm:$0xf]
        %v1603 = vld [vmem:[%s4 + $0x8] sm:$0xf]
        %v1604 = vld [vmem:[%s4 + $0xc] sm:$0xf]
        %v1605 = vld [vmem:[%s4 + $0x10] sm:$0xf]
        %v1606 = vld [vmem:[%s4 + $0x14] sm:$0xf]
        %v1607 = vld [vmem:[%s4 + $0x18] sm:$0xf]
        %v1608 = vld [vmem:[%s4 + $0x1c] sm:$0xf]
        %v1611 = vunpack.c.l.b16 %v1601
        %v1612 = vunpack.c.l.b16 %v1602
        %v1613 = vpack.c.b16 %v1612, %v1611
        %v1616 = vsel %vm709, %v1597, 0
        %1618 = vmatprep.subr.bf16.mxu0 0
        %1619 = vmatpush1.bf16.msra.mxu0 %v1613
        %1620 = vmatprep.subr.bf16.mxu0 0
        %1621 = vmatpush1.bf16.msra.mxu0 0
        %1622 = vmatprep.subr.bf16.mxu0 0
        %1623 = vmatpush1.bf16.msra.mxu0 0
        %1624 = vmatprep.subr.bf16.mxu0 0
        %1625 = vmatpush1.bf16.msra.mxu0 0
        %1626 = vmatprep.subr.bf16.mxu0 0
        %1627 = vmatpush1.bf16.msra.mxu0 0
        %1628 = vmatprep.subr.bf16.mxu0 0
        %1629 = vmatpush1.bf16.msra.mxu0 0
        %1630 = vmatprep.subr.bf16.mxu0 0
        %1631 = vmatpush1.bf16.msra.mxu0 0
        %1632 = vmatprep.subr.bf16.mxu0 0
        %1633 = vmatpush1.bf16.msra.mxu0 0
        %1634 = vmatprep.subr.bf16.mxu0 0
        %1635 = vmatpush1.bf16.msra.mxu0 0
        %1636 = vmatprep.subr.bf16.mxu0 0
        %1637 = vmatpush1.bf16.msra.mxu0 0
        %1638 = vmatprep.subr.bf16.mxu0 0
        %1639 = vmatpush1.bf16.msra.mxu0 0
        %1640 = vmatprep.subr.bf16.mxu0 0
        %1641 = vmatpush1.bf16.msra.mxu0 0
        %1642 = vmatprep.subr.bf16.mxu0 0
        %1643 = vmatpush1.bf16.msra.mxu0 0
        %1644 = vmatprep.subr.bf16.mxu0 0
        %1645 = vmatpush1.bf16.msra.mxu0 0
        %1646 = vmatprep.subr.bf16.mxu0 0
        %1647 = vmatpush1.bf16.msra.mxu0 0
        %1648 = vmatprep.subr.bf16.mxu0 0
        %1649 = vmatpush1.bf16.msra.mxu0 0
        %1650 = vmatprep.mubr.bf16.mxu0 0
        %1651 = vmatmul.mubr.bf16.gmra.mrb[0].mxu0 %v1616
        %v1652 = vpop.f32.mrb[0].mxu0
        %v1653 = vadd.f32 0.0, %v1652
        %v1654 = vpop.f32.mrb[0].mxu0
        %v1655 = vpop.f32.mrb[0].mxu0
        %v1656 = vadd.f32 0.0, %v1655
        %v1657 = vpop.f32.mrb[0].mxu0
        %1658 = vdwg.mxu0
        %v1661 = vunpack.c.l.b16 %v1603
        %v1662 = vunpack.c.l.b16 %v1604
        %v1663 = vpack.c.b16 %v1662, %v1661
        %v1666 = vsel %vm709, %v1598, 0
        %1668 = vmatprep.subr.bf16.mxu0 0
        %1669 = vmatpush1.bf16.msra.mxu0 %v1663
        %1670 = vmatprep.subr.bf16.mxu0 0
        %1671 = vmatpush1.bf16.msra.mxu0 0
        %1672 = vmatprep.subr.bf16.mxu0 0
        %1673 = vmatpush1.bf16.msra.mxu0 0
        %1674 = vmatprep.subr.bf16.mxu0 0
        %1675 = vmatpush1.bf16.msra.mxu0 0
        %1676 = vmatprep.subr.bf16.mxu0 0
        %1677 = vmatpush1.bf16.msra.mxu0 0
        %1678 = vmatprep.subr.bf16.mxu0 0
        %1679 = vmatpush1.bf16.msra.mxu0 0
        %1680 = vmatprep.subr.bf16.mxu0 0
        %1681 = vmatpush1.bf16.msra.mxu0 0
        %1682 = vmatprep.subr.bf16.mxu0 0
        %1683 = vmatpush1.bf16.msra.mxu0 0
        %1684 = vmatprep.subr.bf16.mxu0 0
        %1685 = vmatpush1.bf16.msra.mxu0 0
        %1686 = vmatprep.subr.bf16.mxu0 0
        %1687 = vmatpush1.bf16.msra.mxu0 0
        %1688 = vmatprep.subr.bf16.mxu0 0
        %1689 = vmatpush1.bf16.msra.mxu0 0
        %1690 = vmatprep.subr.bf16.mxu0 0
        %1691 = vmatpush1.bf16.msra.mxu0 0
        %1692 = vmatprep.subr.bf16.mxu0 0
        %1693 = vmatpush1.bf16.msra.mxu0 0
        %1694 = vmatprep.subr.bf16.mxu0 0
        %1695 = vmatpush1.bf16.msra.mxu0 0
        %1696 = vmatprep.subr.bf16.mxu0 0
        %1697 = vmatpush1.bf16.msra.mxu0 0
        %1698 = vmatprep.subr.bf16.mxu0 0
        %1699 = vmatpush1.bf16.msra.mxu0 0
        %1700 = vmatprep.mubr.bf16.mxu0 0
        %1701 = vmatmul.mubr.bf16.gmra.mrb[0].mxu0 %v1666
        %v1702 = vpop.f32.mrb[0].mxu0
        %v1703 = vadd.f32 0.0, %v1702
        %v1704 = vpop.f32.mrb[0].mxu0
        %v1705 = vpop.f32.mrb[0].mxu0
        %v1706 = vadd.f32 0.0, %v1705
        %v1707 = vpop.f32.mrb[0].mxu0
        %1708 = vdwg.mxu0
        %v1711 = vunpack.c.l.b16 %v1605
        %v1712 = vunpack.c.l.b16 %v1606
        %v1713 = vpack.c.b16 %v1712, %v1711
        %v1716 = vsel %vm709, %v1599, 0
        %1718 = vmatprep.subr.bf16.mxu0 0
        %1719 = vmatpush1.bf16.msra.mxu0 %v1713
        %1720 = vmatprep.subr.bf16.mxu0 0
        %1721 = vmatpush1.bf16.msra.mxu0 0
        %1722 = vmatprep.subr.bf16.mxu0 0
        %1723 = vmatpush1.bf16.msra.mxu0 0
        %1724 = vmatprep.subr.bf16.mxu0 0
        %1725 = vmatpush1.bf16.msra.mxu0 0
        %1726 = vmatprep.subr.bf16.mxu0 0
        %1727 = vmatpush1.bf16.msra.mxu0 0
        %1728 = vmatprep.subr.bf16.mxu0 0
        %1729 = vmatpush1.bf16.msra.mxu0 0
        %1730 = vmatprep.subr.bf16.mxu0 0
        %1731 = vmatpush1.bf16.msra.mxu0 0
        %1732 = vmatprep.subr.bf16.mxu0 0
        %1733 = vmatpush1.bf16.msra.mxu0 0
        %1734 = vmatprep.subr.bf16.mxu0 0
        %1735 = vmatpush1.bf16.msra.mxu0 0
        %1736 = vmatprep.subr.bf16.mxu0 0
        %1737 = vmatpush1.bf16.msra.mxu0 0
        %1738 = vmatprep.subr.bf16.mxu0 0
        %1739 = vmatpush1.bf16.msra.mxu0 0
        %1740 = vmatprep.subr.bf16.mxu0 0
        %1741 = vmatpush1.bf16.msra.mxu0 0
        %1742 = vmatprep.subr.bf16.mxu0 0
        %1743 = vmatpush1.bf16.msra.mxu0 0
        %1744 = vmatprep.subr.bf16.mxu0 0
        %1745 = vmatpush1.bf16.msra.mxu0 0
        %1746 = vmatprep.subr.bf16.mxu0 0
        %1747 = vmatpush1.bf16.msra.mxu0 0
        %1748 = vmatprep.subr.bf16.mxu0 0
        %1749 = vmatpush1.bf16.msra.mxu0 0
        %1750 = vmatprep.mubr.bf16.mxu0 0
        %1751 = vmatmul.mubr.bf16.gmra.mrb[0].mxu0 %v1716
        %v1752 = vpop.f32.mrb[0].mxu0
        %v1753 = vadd.f32 0.0, %v1752
        %v1754 = vpop.f32.mrb[0].mxu0
        %v1755 = vpop.f32.mrb[0].mxu0
        %v1756 = vadd.f32 0.0, %v1755
        %v1757 = vpop.f32.mrb[0].mxu0
        %1758 = vdwg.mxu0
        %v1761 = vunpack.c.l.b16 %v1607
        %v1762 = vunpack.c.l.b16 %v1608
        %v1763 = vpack.c.b16 %v1762, %v1761
        %v1766 = vsel %vm709, %v1600, 0
        %1768 = vmatprep.subr.bf16.mxu0 0
        %1769 = vmatpush1.bf16.msra.mxu0 %v1763
        %1770 = vmatprep.subr.bf16.mxu0 0
        %1771 = vmatpush1.bf16.msra.mxu0 0
        %1772 = vmatprep.subr.bf16.mxu0 0
        %1773 = vmatpush1.bf16.msra.mxu0 0
        %1774 = vmatprep.subr.bf16.mxu0 0
        %1775 = vmatpush1.bf16.msra.mxu0 0
        %1776 = vmatprep.subr.bf16.mxu0 0
        %1777 = vmatpush1.bf16.msra.mxu0 0
        %1778 = vmatprep.subr.bf16.mxu0 0
        %1779 = vmatpush1.bf16.msra.mxu0 0
        %1780 = vmatprep.subr.bf16.mxu0 0
        %1781 = vmatpush1.bf16.msra.mxu0 0
        %1782 = vmatprep.subr.bf16.mxu0 0
        %1783 = vmatpush1.bf16.msra.mxu0 0
        %1784 = vmatprep.subr.bf16.mxu0 0
        %1785 = vmatpush1.bf16.msra.mxu0 0
        %1786 = vmatprep.subr.bf16.mxu0 0
        %1787 = vmatpush1.bf16.msra.mxu0 0
        %1788 = vmatprep.subr.bf16.mxu0 0
        %1789 = vmatpush1.bf16.msra.mxu0 0
        %1790 = vmatprep.subr.bf16.mxu0 0
        %1791 = vmatpush1.bf16.msra.mxu0 0
        %1792 = vmatprep.subr.bf16.mxu0 0
        %1793 = vmatpush1.bf16.msra.mxu0 0
        %1794 = vmatprep.subr.bf16.mxu0 0
        %1795 = vmatpush1.bf16.msra.mxu0 0
        %1796 = vmatprep.subr.bf16.mxu0 0
        %1797 = vmatpush1.bf16.msra.mxu0 0
        %1798 = vmatprep.subr.bf16.mxu0 0
        %1799 = vmatpush1.bf16.msra.mxu0 0
        %1800 = vmatprep.mubr.bf16.mxu0 0
        %1801 = vmatmul.mubr.bf16.gmra.mrb[0].mxu0 %v1766
        %v1802 = vpop.f32.mrb[0].mxu0
        %v1803 = vadd.f32 0.0, %v1802
        %v1804 = vpop.f32.mrb[0].mxu0
        %v1805 = vpop.f32.mrb[0].mxu0
        %v1806 = vadd.f32 0.0, %v1805
        %v1807 = vpop.f32.mrb[0].mxu0
        %1808 = vdwg.mxu0
        %vm1809 = vcmask 523264
        %v1810 = vsel %vm1809, %v1653, 0.0
        %v1811 = vsel %vm1809, %v1703, 0.0
        %v1812 = vadd.f32 %v1810, %v1811
        %v1813 = vsel %vm1809, %v1753, 0.0
        %v1814 = vadd.f32 %v1812, %v1813
        %v1815 = vsel %vm1809, %v1803, 0.0
        %v1816 = vadd.f32 %v1814, %v1815
        %v1817 = vsel %vm1809, %v1656, 0.0
        %v1818 = vsel %vm1809, %v1706, 0.0
        %v1819 = vadd.f32 %v1817, %v1818
        %v1820 = vsel %vm1809, %v1756, 0.0
        %v1821 = vadd.f32 %v1819, %v1820
        %v1822 = vsel %vm1809, %v1806, 0.0
        %v1823 = vadd.f32 %v1821, %v1822
        %v1824 = vld [vmem:[%s5] sm:$0x1]
        %v1826 = vlaneseq
        %v1827 = vshrl.u32 %v1826, 7
        %v1828 = vsub.s32 0, %v1827
        %v1829 = vrot.slane %v1824, %v1828
        %v1831 = vadd.f32 %v1816, %v1829
        %v1832 = vadd.f32 %v1823, %v1829
        %v1833 = vld [vmem:[%s6] sm:$0x1]
        %v1834 = vld [vmem:[%s7] sm:$0x1]
        %v1835 = vsel %vm1809, %v1831, 0.0
        %1836 = vadd.xlane.f32.xlu0 %v1835
        %v1837 = vpop.xlane.xlu0 %1836
        %v1838 = vsel %vm1809, %v1832, 0.0
        %1839 = vadd.xlane.f32.xlu0 %v1838
        %v1840 = vpop.xlane.xlu0 %1839
        %v1841 = vrcp.pop 64.0
        %v1842 = vmul.f32 %v1837, %v1841
        %v1843 = vmul.f32 %v1840, %v1841
        %v1844 = vsub.f32 %v1831, %v1842
        %v1845 = vsub.f32 %v1832, %v1843
        %v1846 = vmul.f32 %v1844, %v1844
        %v1847 = vmul.f32 %v1845, %v1845
        %v1848 = vsel %vm1809, %v1846, 0.0
        %1849 = vadd.xlane.f32.xlu0 %v1848
        %v1850 = vpop.xlane.xlu0 %1849
        %v1851 = vsel %vm1809, %v1847, 0.0
        %1852 = vadd.xlane.f32.xlu0 %v1851
        %v1853 = vpop.xlane.xlu0 %1852
        %v1854 = vmul.f32 %v1850, %v1841
        %v1855 = vmul.f32 %v1853, %v1841
        %v1856 = vadd.f32 %v1854, 1e-06
        %v1857 = vadd.f32 %v1855, 1e-06
        %v1858 = vrsqrt.pop %v1856
        %v1859 = vrsqrt.pop %v1857
        %v1860 = vmul.f32 %v1844, %v1858
        %v1861 = vmul.f32 %v1845, %v1859
        %v1863 = vlaneseq
        %v1864 = vshrl.u32 %v1863, 7
        %v1865 = vsub.s32 0, %v1864
        %v1866 = vrot.slane %v1833, %v1865
        %v1868 = vmul.f32 %v1860, %v1866
        %v1869 = vmul.f32 %v1861, %v1866
        %v1871 = vlaneseq
        %v1872 = vshrl.u32 %v1871, 7
        %v1873 = vsub.s32 0, %v1872
        %v1874 = vrot.slane %v1834, %v1873
        %v1876 = vadd.f32 %v1868, %v1874
        %v1877 = vadd.f32 %v1869, %v1874
        %v1878 = vpack.c.bf16 %v1877, %v1876
        %v1879 = vld [vmem:[%s8] sm:$0xff]
        %v1880 = vld [vmem:[%s8 + $0x8] sm:$0xff]
        %v1881 = vld [vmem:[%s8 + $0x10] sm:$0xff]
        %v1882 = vld [vmem:[%s8 + $0x18] sm:$0xff]
        %v1883 = vld [vmem:[%s8 + $0x20] sm:$0xff]
        %v1884 = vld [vmem:[%s8 + $0x28] sm:$0xff]
        %v1885 = vld [vmem:[%s8 + $0x30] sm:$0xff]
        %v1886 = vld [vmem:[%s8 + $0x38] sm:$0xff]
        %v1887 = vld [vmem:[%s9] sm:$0x3]
        %v1889 = vlaneseq
        %v1890 = vshrl.u32 %v1889, 7
        %v1891 = vsub.s32 0, %v1890
        %v1892 = vrot.slane %v1887, %v1891
        %v1893 = vlaneseq
        %v1894 = vshrl.u32 %v1893, 7
        %v1895 = vsub.s32 1, %v1894
        %v1896 = vrot.slane %v1887, %v1895
        %v1907 = vunpack.c.l.b16 %v1879
        %v1908 = vunpack.c.h.b16 %v1879
        %v1909 = vunpack.c.l.b16 %v1880
        %v1910 = vunpack.c.h.b16 %v1880
        %v1911 = vunpack.c.l.b16 %v1881
        %v1912 = vunpack.c.h.b16 %v1881
        %v1913 = vunpack.c.l.b16 %v1882
        %v1914 = vunpack.c.h.b16 %v1882
        %v1915 = vunpack.c.l.b16 %v1883
        %v1916 = vunpack.c.h.b16 %v1883
        %v1917 = vunpack.c.l.b16 %v1884
        %v1918 = vunpack.c.h.b16 %v1884
        %v1919 = vunpack.c.l.b16 %v1885
        %v1920 = vunpack.c.h.b16 %v1885
        %v1921 = vunpack.c.l.b16 %v1886
        %v1922 = vunpack.c.h.b16 %v1886
        %v1923 = vpack.c.b16 %v1909, %v1907
        %v1924 = vpack.c.b16 %v1910, %v1908
        %v1925 = vpack.c.b16 %v1913, %v1911
        %v1926 = vpack.c.b16 %v1914, %v1912
        %v1927 = vpack.c.b16 %v1917, %v1915
        %v1928 = vpack.c.b16 %v1918, %v1916
        %v1929 = vpack.c.b16 %v1921, %v1919
        %v1930 = vpack.c.b16 %v1922, %v1920
        %v1940 = vsel %vm1809, %v1878, 0
        %1942 = vmatprep.subr.bf16.mxu0 %v1924
        %1943 = vmatpush1.bf16.msra.mxu0 %v1923
        %1944 = vmatprep.subr.bf16.mxu0 %v1926
        %1945 = vmatpush1.bf16.msra.mxu0 %v1925
        %1946 = vmatprep.subr.bf16.mxu0 %v1928
        %1947 = vmatpush1.bf16.msra.mxu0 %v1927
        %1948 = vmatprep.subr.bf16.mxu0 %v1930
        %1949 = vmatpush1.bf16.msra.mxu0 %v1929
        %1950 = vmatprep.subr.bf16.mxu0 0
        %1951 = vmatpush1.bf16.msra.mxu0 0
        %1952 = vmatprep.subr.bf16.mxu0 0
        %1953 = vmatpush1.bf16.msra.mxu0 0
        %1954 = vmatprep.subr.bf16.mxu0 0
        %1955 = vmatpush1.bf16.msra.mxu0 0
        %1956 = vmatprep.subr.bf16.mxu0 0
        %1957 = vmatpush1.bf16.msra.mxu0 0
        %1958 = vmatprep.subr.bf16.mxu0 0
        %1959 = vmatpush1.bf16.msra.mxu0 0
        %1960 = vmatprep.subr.bf16.mxu0 0
        %1961 = vmatpush1.bf16.msra.mxu0 0
        %1962 = vmatprep.subr.bf16.mxu0 0
        %1963 = vmatpush1.bf16.msra.mxu0 0
        %1964 = vmatprep.subr.bf16.mxu0 0
        %1965 = vmatpush1.bf16.msra.mxu0 0
        %1966 = vmatprep.subr.bf16.mxu0 0
        %1967 = vmatpush1.bf16.msra.mxu0 0
        %1968 = vmatprep.subr.bf16.mxu0 0
        %1969 = vmatpush1.bf16.msra.mxu0 0
        %1970 = vmatprep.subr.bf16.mxu0 0
        %1971 = vmatpush1.bf16.msra.mxu0 0
        %1972 = vmatprep.subr.bf16.mxu0 0
        %1973 = vmatpush1.bf16.msra.mxu0 0
        %1974 = vmatprep.mubr.bf16.mxu0 0
        %1975 = vmatmul.mubr.bf16.gmra.mrb[0].mxu0 %v1940
        %v1976 = vpop.f32.mrb[0].mxu0
        %v1977 = vadd.f32 %v1892, %v1976
        %v1978 = vpop.f32.mrb[0].mxu0
        %v1979 = vadd.f32 %v1896, %v1978
        %v1980 = vpop.f32.mrb[0].mxu0
        %v1981 = vadd.f32 %v1892, %v1980
        %v1982 = vpop.f32.mrb[0].mxu0
        %v1983 = vadd.f32 %v1896, %v1982
        %1984 = vdwg.mxu0
        %v1985 = vmul.f32 %v1977, %v1977
        %v1986 = vmul.f32 %v1979, %v1979
        %v1987 = vmul.f32 %v1981, %v1981
        %v1988 = vmul.f32 %v1983, %v1983
        %v1989 = vmul.f32 %v1977, %v1985
        %v1990 = vmul.f32 %v1979, %v1986
        %v1991 = vmul.f32 %v1981, %v1987
        %v1992 = vmul.f32 %v1983, %v1988
        %v1993 = vmul.f32 %v1989, 0.044715
        %v1994 = vmul.f32 %v1990, 0.044715
        %v1995 = vmul.f32 %v1991, 0.044715
        %v1996 = vmul.f32 %v1992, 0.044715
        %v1997 = vadd.f32 %v1977, %v1993
        %v1998 = vadd.f32 %v1979, %v1994
        %v1999 = vadd.f32 %v1981, %v1995
        %v2000 = vadd.f32 %v1983, %v1996
        %v2001 = vmul.f32 %v1997, 0.7978846
        %v2002 = vmul.f32 %v1998, 0.7978846
        %v2003 = vmul.f32 %v1999, 0.7978846
        %v2004 = vmul.f32 %v2000, 0.7978846
        %v2005 = vtanh.pop %v2001
        %v2006 = vtanh.pop %v2002
        %v2007 = vtanh.pop %v2003
        %v2008 = vtanh.pop %v2004
        %v2009 = vadd.f32 %v2005, 1.0
        %v2010 = vadd.f32 %v2006, 1.0
        %v2011 = vadd.f32 %v2007, 1.0
        %v2012 = vadd.f32 %v2008, 1.0
        %v2013 = vmul.f32 %v2009, 0.5
        %v2014 = vmul.f32 %v2010, 0.5
        %v2015 = vmul.f32 %v2011, 0.5
        %v2016 = vmul.f32 %v2012, 0.5
        %v2017 = vmul.f32 %v1977, %v2013
        %v2018 = vmul.f32 %v1979, %v2014
        %v2019 = vmul.f32 %v1981, %v2015
        %v2020 = vmul.f32 %v1983, %v2016
        %v2021 = vpack.c.bf16 %v2019, %v2017
        %v2022 = vpack.c.bf16 %v2020, %v2018
        %v2023 = vld [vmem:[%s10] sm:$0xf]
        %v2024 = vld [vmem:[%s10 + $0x4] sm:$0xf]
        %v2025 = vld [vmem:[%s10 + $0x8] sm:$0xf]
        %v2026 = vld [vmem:[%s10 + $0xc] sm:$0xf]
        %v2027 = vld [vmem:[%s10 + $0x10] sm:$0xf]
        %v2028 = vld [vmem:[%s10 + $0x14] sm:$0xf]
        %v2029 = vld [vmem:[%s10 + $0x18] sm:$0xf]
        %v2030 = vld [vmem:[%s10 + $0x1c] sm:$0xf]
        %v2031 = vld [vmem:[%s10 + $0x20] sm:$0xf]
        %v2032 = vld [vmem:[%s10 + $0x24] sm:$0xf]
        %v2033 = vld [vmem:[%s10 + $0x28] sm:$0xf]
        %v2034 = vld [vmem:[%s10 + $0x2c] sm:$0xf]
        %v2035 = vld [vmem:[%s10 + $0x30] sm:$0xf]
        %v2036 = vld [vmem:[%s10 + $0x34] sm:$0xf]
        %v2037 = vld [vmem:[%s10 + $0x38] sm:$0xf]
        %v2038 = vld [vmem:[%s10 + $0x3c] sm:$0xf]
        %v2039 = vld [vmem:[%s10 + $0x40] sm:$0xf]
        %v2040 = vld [vmem:[%s10 + $0x44] sm:$0xf]
        %v2041 = vld [vmem:[%s10 + $0x48] sm:$0xf]
        %v2042 = vld [vmem:[%s10 + $0x4c] sm:$0xf]
        %v2043 = vld [vmem:[%s10 + $0x50] sm:$0xf]
        %v2044 = vld [vmem:[%s10 + $0x54] sm:$0xf]
        %v2045 = vld [vmem:[%s10 + $0x58] sm:$0xf]
        %v2046 = vld [vmem:[%s10 + $0x5c] sm:$0xf]
        %v2047 = vld [vmem:[%s10 + $0x60] sm:$0xf]
        %v2048 = vld [vmem:[%s10 + $0x64] sm:$0xf]
        %v2049 = vld [vmem:[%s10 + $0x68] sm:$0xf]
        %v2050 = vld [vmem:[%s10 + $0x6c] sm:$0xf]
        %v2051 = vld [vmem:[%s10 + $0x70] sm:$0xf]
        %v2052 = vld [vmem:[%s10 + $0x74] sm:$0xf]
        %v2053 = vld [vmem:[%s10 + $0x78] sm:$0xf]
        %v2054 = vld [vmem:[%s10 + $0x7c] sm:$0xf]
        %v2055 = vld [vmem:[%s11] sm:$0x1]
        %v2057 = vlaneseq
        %v2058 = vshrl.u32 %v2057, 7
        %v2059 = vsub.s32 0, %v2058
        %v2060 = vrot.slane %v2055, %v2059
        %v2094 = vunpack.c.l.b16 %v2023
        %v2095 = vunpack.c.l.b16 %v2024
        %v2096 = vunpack.c.l.b16 %v2025
        %v2097 = vunpack.c.l.b16 %v2026
        %v2098 = vunpack.c.l.b16 %v2027
        %v2099 = vunpack.c.l.b16 %v2028
        %v2100 = vunpack.c.l.b16 %v2029
        %v2101 = vunpack.c.l.b16 %v2030
        %v2102 = vunpack.c.l.b16 %v2031
        %v2103 = vunpack.c.l.b16 %v2032
        %v2104 = vunpack.c.l.b16 %v2033
        %v2105 = vunpack.c.l.b16 %v2034
        %v2106 = vunpack.c.l.b16 %v2035
        %v2107 = vunpack.c.l.b16 %v2036
        %v2108 = vunpack.c.l.b16 %v2037
        %v2109 = vunpack.c.l.b16 %v2038
        %v2110 = vunpack.c.l.b16 %v2039
        %v2111 = vunpack.c.l.b16 %v2040
        %v2112 = vunpack.c.l.b16 %v2041
        %v2113 = vunpack.c.l.b16 %v2042
        %v2114 = vunpack.c.l.b16 %v2043
        %v2115 = vunpack.c.l.b16 %v2044
        %v2116 = vunpack.c.l.b16 %v2045
        %v2117 = vunpack.c.l.b16 %v2046
        %v2118 = vunpack.c.l.b16 %v2047
        %v2119 = vunpack.c.l.b16 %v2048
        %v2120 = vunpack.c.l.b16 %v2049
        %v2121 = vunpack.c.l.b16 %v2050
        %v2122 = vunpack.c.l.b16 %v2051
        %v2123 = vunpack.c.l.b16 %v2052
        %v2124 = vunpack.c.l.b16 %v2053
        %v2125 = vunpack.c.l.b16 %v2054
        %v2126 = vpack.c.b16 %v2095, %v2094
        %v2127 = vpack.c.b16 %v2097, %v2096
        %v2128 = vpack.c.b16 %v2099, %v2098
        %v2129 = vpack.c.b16 %v2101, %v2100
        %v2130 = vpack.c.b16 %v2103, %v2102
        %v2131 = vpack.c.b16 %v2105, %v2104
        %v2132 = vpack.c.b16 %v2107, %v2106
        %v2133 = vpack.c.b16 %v2109, %v2108
        %v2134 = vpack.c.b16 %v2111, %v2110
        %v2135 = vpack.c.b16 %v2113, %v2112
        %v2136 = vpack.c.b16 %v2115, %v2114
        %v2137 = vpack.c.b16 %v2117, %v2116
        %v2138 = vpack.c.b16 %v2119, %v2118
        %v2139 = vpack.c.b16 %v2121, %v2120
        %v2140 = vpack.c.b16 %v2123, %v2122
        %v2141 = vpack.c.b16 %v2125, %v2124
        %2158 = vmatprep.subr.bf16.mxu0 0
        %2159 = vmatpush1.bf16.msra.mxu0 %v2126
        %2160 = vmatprep.subr.bf16.mxu0 0
        %2161 = vmatpush1.bf16.msra.mxu0 %v2127
        %2162 = vmatprep.subr.bf16.mxu0 0
        %2163 = vmatpush1.bf16.msra.mxu0 %v2128
        %2164 = vmatprep.subr.bf16.mxu0 0
        %2165 = vmatpush1.bf16.msra.mxu0 %v2129
        %2166 = vmatprep.subr.bf16.mxu0 0
        %2167 = vmatpush1.bf16.msra.mxu0 %v2130
        %2168 = vmatprep.subr.bf16.mxu0 0
        %2169 = vmatpush1.bf16.msra.mxu0 %v2131
        %2170 = vmatprep.subr.bf16.mxu0 0
        %2171 = vmatpush1.bf16.msra.mxu0 %v2132
        %2172 = vmatprep.subr.bf16.mxu0 0
        %2173 = vmatpush1.bf16.msra.mxu0 %v2133
        %2174 = vmatprep.subr.bf16.mxu0 0
        %2175 = vmatpush1.bf16.msra.mxu0 %v2134
        %2176 = vmatprep.subr.bf16.mxu0 0
        %2177 = vmatpush1.bf16.msra.mxu0 %v2135
        %2178 = vmatprep.subr.bf16.mxu0 0
        %2179 = vmatpush1.bf16.msra.mxu0 %v2136
        %2180 = vmatprep.subr.bf16.mxu0 0
        %2181 = vmatpush1.bf16.msra.mxu0 %v2137
        %2182 = vmatprep.subr.bf16.mxu0 0
        %2183 = vmatpush1.bf16.msra.mxu0 %v2138
        %2184 = vmatprep.subr.bf16.mxu0 0
        %2185 = vmatpush1.bf16.msra.mxu0 %v2139
        %2186 = vmatprep.subr.bf16.mxu0 0
        %2187 = vmatpush1.bf16.msra.mxu0 %v2140
        %2188 = vmatprep.subr.bf16.mxu0 0
        %2189 = vmatpush1.bf16.msra.mxu0 %v2141
        %2190 = vmatprep.mubr.bf16.mxu0 %v2022
        %2191 = vmatmul.mubr.bf16.gmra.mrb[0].mxu0 %v2021
        %v2192 = vpop.f32.mrb[0].mxu0
        %v2193 = vadd.f32 %v2060, %v2192
        %v2194 = vpop.f32.mrb[0].mxu0
        %v2195 = vpop.f32.mrb[0].mxu0
        %v2196 = vadd.f32 %v2060, %v2195
        %v2197 = vpop.f32.mrb[0].mxu0
        %2198 = vdwg.mxu0
        %v2199 = vadd.f32 %v1831, %v2193
        %v2200 = vadd.f32 %v1832, %v2196
        %v2201 = vld [vmem:[%s12] sm:$0x1]
        %v2202 = vld [vmem:[%s13] sm:$0x1]
        %v2203 = vsel %vm1809, %v2199, 0.0
        %2204 = vadd.xlane.f32.xlu0 %v2203
        %v2205 = vpop.xlane.xlu0 %2204
        %v2206 = vsel %vm1809, %v2200, 0.0
        %2207 = vadd.xlane.f32.xlu0 %v2206
        %v2208 = vpop.xlane.xlu0 %2207
        %v2209 = vmul.f32 %v2205, %v1841
        %v2210 = vmul.f32 %v2208, %v1841
        %v2211 = vsub.f32 %v2199, %v2209
        %v2212 = vsub.f32 %v2200, %v2210
        %v2213 = vmul.f32 %v2211, %v2211
        %v2214 = vmul.f32 %v2212, %v2212
        %v2215 = vsel %vm1809, %v2213, 0.0
        %2216 = vadd.xlane.f32.xlu0 %v2215
        %v2217 = vpop.xlane.xlu0 %2216
        %v2218 = vsel %vm1809, %v2214, 0.0
        %2219 = vadd.xlane.f32.xlu0 %v2218
        %v2220 = vpop.xlane.xlu0 %2219
        %v2221 = vmul.f32 %v2217, %v1841
        %v2222 = vmul.f32 %v2220, %v1841
        %v2223 = vadd.f32 %v2221, 1e-05
        %v2224 = vadd.f32 %v2222, 1e-05
        %v2225 = vrsqrt.pop %v2223
        %v2226 = vrsqrt.pop %v2224
        %v2227 = vmul.f32 %v2211, %v2225
        %v2228 = vmul.f32 %v2212, %v2226
        %v2230 = vlaneseq
        %v2231 = vshrl.u32 %v2230, 7
        %v2232 = vsub.s32 0, %v2231
        %v2233 = vrot.slane %v2201, %v2232
        %v2235 = vmul.f32 %v2227, %v2233
        %v2236 = vmul.f32 %v2228, %v2233
        %v2238 = vlaneseq
        %v2239 = vshrl.u32 %v2238, 7
        %v2240 = vsub.s32 0, %v2239
        %v2241 = vrot.slane %v2202, %v2240
        %v2243 = vadd.f32 %v2235, %v2241
        %v2244 = vadd.f32 %v2236, %v2241
        %v2245 = vpack.c.bf16 %v2244, %v2243
        %v2246 = vld [vmem:[%s14] sm:$0xf]
        %v2247 = vld [vmem:[%s14 + $0x4] sm:$0xf]
        %v2248 = vld [vmem:[%s14 + $0x8] sm:$0xf]
        %v2249 = vld [vmem:[%s14 + $0xc] sm:$0xf]
        %v2250 = vld [vmem:[%s14 + $0x10] sm:$0xf]
        %v2251 = vld [vmem:[%s14 + $0x14] sm:$0xf]
        %v2252 = vld [vmem:[%s14 + $0x18] sm:$0xf]
        %v2253 = vld [vmem:[%s14 + $0x1c] sm:$0xf]
        %v2254 = vld [vmem:[%s15] sm:$0x1]
        %v2256 = vlaneseq
        %v2257 = vshrl.u32 %v2256, 7
        %v2258 = vsub.s32 0, %v2257
        %v2259 = vrot.slane %v2254, %v2258
        %v2269 = vunpack.c.l.b16 %v2246
        %v2270 = vunpack.c.l.b16 %v2247
        %v2271 = vunpack.c.l.b16 %v2248
        %v2272 = vunpack.c.l.b16 %v2249
        %v2273 = vunpack.c.l.b16 %v2250
        %v2274 = vunpack.c.l.b16 %v2251
        %v2275 = vunpack.c.l.b16 %v2252
        %v2276 = vunpack.c.l.b16 %v2253
        %v2277 = vpack.c.b16 %v2270, %v2269
        %v2278 = vpack.c.b16 %v2272, %v2271
        %v2279 = vpack.c.b16 %v2274, %v2273
        %v2280 = vpack.c.b16 %v2276, %v2275
        %v2286 = vsel %vm1809, %v2245, 0
        %2288 = vmatprep.subr.bf16.mxu0 0
        %2289 = vmatpush1.bf16.msra.mxu0 %v2277
        %2290 = vmatprep.subr.bf16.mxu0 0
        %2291 = vmatpush1.bf16.msra.mxu0 %v2278
        %2292 = vmatprep.subr.bf16.mxu0 0
        %2293 = vmatpush1.bf16.msra.mxu0 %v2279
        %2294 = vmatprep.subr.bf16.mxu0 0
        %2295 = vmatpush1.bf16.msra.mxu0 %v2280
        %2296 = vmatprep.subr.bf16.mxu0 0
        %2297 = vmatpush1.bf16.msra.mxu0 0
        %2298 = vmatprep.subr.bf16.mxu0 0
        %2299 = vmatpush1.bf16.msra.mxu0 0
        %2300 = vmatprep.subr.bf16.mxu0 0
        %2301 = vmatpush1.bf16.msra.mxu0 0
        %2302 = vmatprep.subr.bf16.mxu0 0
        %2303 = vmatpush1.bf16.msra.mxu0 0
        %2304 = vmatprep.subr.bf16.mxu0 0
        %2305 = vmatpush1.bf16.msra.mxu0 0
        %2306 = vmatprep.subr.bf16.mxu0 0
        %2307 = vmatpush1.bf16.msra.mxu0 0
        %2308 = vmatprep.subr.bf16.mxu0 0
        %2309 = vmatpush1.bf16.msra.mxu0 0
        %2310 = vmatprep.subr.bf16.mxu0 0
        %2311 = vmatpush1.bf16.msra.mxu0 0
        %2312 = vmatprep.subr.bf16.mxu0 0
        %2313 = vmatpush1.bf16.msra.mxu0 0
        %2314 = vmatprep.subr.bf16.mxu0 0
        %2315 = vmatpush1.bf16.msra.mxu0 0
        %2316 = vmatprep.subr.bf16.mxu0 0
        %2317 = vmatpush1.bf16.msra.mxu0 0
        %2318 = vmatprep.subr.bf16.mxu0 0
        %2319 = vmatpush1.bf16.msra.mxu0 0
        %2320 = vmatprep.mubr.bf16.mxu0 0
        %2321 = vmatmul.mubr.bf16.gmra.mrb[0].mxu0 %v2286
        %v2322 = vpop.f32.mrb[0].mxu0
        %v2323 = vadd.f32 %v2259, %v2322
        %v2324 = vpop.f32.mrb[0].mxu0
        %v2325 = vpop.f32.mrb[0].mxu0
        %v2326 = vadd.f32 %v2259, %v2325
        %v2327 = vpop.f32.mrb[0].mxu0
        %2328 = vdwg.mxu0
        %2329 = vst.msk [vmem:[%s572] sm:$0xff] %vm1809, %v2199
        %2330 = vst.msk [vmem:[%s572 + $0x8] sm:$0xff] %vm1809, %v2200
        %2331 = vst [vmem:[%s585] sm:$0xff] %v2323
        %2332 = vst [vmem:[%s585 + $0x8] sm:$0xff] %v2326
        %s2333 = sand.u32 %s385, 1
        %s2334 = scalar_lea.sflag [#allocation3], %s2333
        %s2335 = sand.u32 %s385, 1
        %s2336 = smul.addr %s2335, 16
        %s2337 = scalar_lea.vmem [#allocation2], %s2336
        %s2338 = sand.u32 %s36, 1
        %s2339 = scalar_lea.sflag [#allocation5], %s2338
        %s2340 = sand.u32 %s411, 1
        %s2341 = scalar_lea.vmem [#allocation4], %s2340
        %s2342 = sand.u32 %s36, 1
        %s2343 = scalar_lea.sflag [#allocation5], %s2342
        %s2344 = sand.u32 %s437, 1
        %s2345 = smul.addr %s2344, 16
        %s2346 = scalar_lea.vmem [#allocation6], %s2345
        // Predicated region
        $region85: #{tpu_custom_call.1} parent=83 // pred_check
          %p2347 = pneg %p395
        $region86: #{tpu_custom_call.1} parent=83 // pred_check_branch
          %2349 = sbr.rel (%p2347) target = $region88
        $region87: #{tpu_custom_call.1} parent=83 // pred_region
          %s2351 = ssub.s32 256, 256
          %2352 = vsyncadd %s2334, %s2351
          %s2353 = smul.addr %s36, 2
          %s2354 = smul.addr %s2353, 128
          %s2355 = scalar_lea.hbm %s16, %s2354
          %s2356 = sshll.u32 %s2337, 4
          %s2357 = int_to_ptr.vmem [resolvable:$true] %s2356
          %2362 = dma.vmem_to_hbm [thread:$0]  %s2357, 256, %s2355, %s2334, 128, 128, 8
        $region88: #{tpu_custom_call.1} parent=83 // pred_fallthru
          _
        // Predicated region
        $region89: #{tpu_custom_call.1} parent=83 // pred_check
          %p2363 = pneg %p421
        $region90: #{tpu_custom_call.1} parent=83 // pred_check_branch
          %2365 = sbr.rel (%p2363) target = $region92
        $region91: #{tpu_custom_call.1} parent=83 // pred_region
          %s2367 = ssub.s32 16, 16
          %2368 = vsyncadd %s2339, %s2367
          %s2369 = smul.addr %s36, 16
          %s2370 = scalar_lea.hbm %s17, %s2369
          %s2372 = sshll.u32 %s2341, 4
          %s2373 = int_to_ptr.vmem [resolvable:$true] %s2372
          %2375 = dma.vmem_to_hbm [thread:$0]  %s2373, 16, %s2370, %s2339
        $region92: #{tpu_custom_call.1} parent=83 // pred_fallthru
          _
        // Predicated region
        $region93: #{tpu_custom_call.1} parent=83 // pred_check
          %p2376 = pneg %p447
        $region94: #{tpu_custom_call.1} parent=83 // pred_check_branch
          %2378 = sbr.rel (%p2376) target = $region96
        $region95: #{tpu_custom_call.1} parent=83 // pred_region
          %s2380 = ssub.s32 256, 256
          %2381 = vsyncadd %s2343, %s2380
          %s2382 = smul.addr %s36, 2
          %s2383 = smul.addr %s2382, 128
          %s2384 = scalar_lea.hbm %s18, %s2383
          %s2385 = sshll.u32 %s2346, 4
          %s2386 = int_to_ptr.vmem [resolvable:$true] %s2385
          %2391 = dma.vmem_to_hbm [thread:$0]  %s2386, 256, %s2384, %s2343, 128, 128, 8
        $region96: #{tpu_custom_call.1} parent=83 // pred_fallthru
          _
      $region84: #{tpu_custom_call.1} parent=5 // pred_fallthru
        _
      %p2392 = scmp.le.s32.totalorder 2, %s31
      // Predicated region
      $region97: #{tpu_custom_call.1} parent=5 // pred_check
        %p2393 = pneg %p2392
      $region98: #{tpu_custom_call.1} parent=5 // pred_check_branch
        %2395 = sbr.rel (%p2393) target = $region100
      $region99: #{tpu_custom_call.1} parent=5 // pred_region
        %s2396 = ssub.s32 %s31, 2
        // Predicated region
        $region101: #{tpu_custom_call.1} parent=99 // pred_check
          %p2397 = pneg %p401
        $region102: #{tpu_custom_call.1} parent=99 // pred_check_branch
          %2399 = sbr.rel (%p2397) target = $region104
        $region103: #{tpu_custom_call.1} parent=99 // pred_region
          %s2400 = sand.u32 %s386, 1
          %s2401 = scalar_lea.sflag [#allocation3], %s2400
          %s2402 = sand.u32 %s386, 1
          %s2403 = smul.addr %s2402, 16
          %s2404 = scalar_lea.vmem [#allocation2], %s2403
          %2405 = dma.done %s2401, 256
        $region104: #{tpu_custom_call.1} parent=99 // pred_fallthru
          _
        // Predicated region
        $region105: #{tpu_custom_call.1} parent=99 // pred_check
          %p2406 = pneg %p427
        $region106: #{tpu_custom_call.1} parent=99 // pred_check_branch
          %2408 = sbr.rel (%p2406) target = $region108
        $region107: #{tpu_custom_call.1} parent=99 // pred_region
          %s2409 = sand.u32 %s37, 1
          %s2410 = scalar_lea.sflag [#allocation5], %s2409
          %s2411 = sand.u32 %s412, 1
          %s2412 = scalar_lea.vmem [#allocation4], %s2411
          %2413 = dma.done %s2410, 16
        $region108: #{tpu_custom_call.1} parent=99 // pred_fallthru
          _
        // Predicated region
        $region109: #{tpu_custom_call.1} parent=99 // pred_check
          %p2414 = pneg %p453
        $region110: #{tpu_custom_call.1} parent=99 // pred_check_branch
          %2416 = sbr.rel (%p2414) target = $region112
        $region111: #{tpu_custom_call.1} parent=99 // pred_region
          %s2417 = sand.u32 %s37, 1
          %s2418 = scalar_lea.sflag [#allocation5], %s2417
          %s2419 = sand.u32 %s438, 1
          %s2420 = smul.addr %s2419, 16
          %s2421 = scalar_lea.vmem [#allocation6], %s2420
          %2422 = dma.done %s2418, 256
        $region112: #{tpu_custom_call.1} parent=99 // pred_fallthru
          _
      $region100: #{tpu_custom_call.1} parent=5 // pred_fallthru
        _
    $region6: #{tpu_custom_call.1} parent=1 // loop_footer
      %s35 = sadd.s32 1, %s31
    $region7: #{tpu_custom_call.1} parent=1 // loop_footer_branch
      %30 = sbr.rel target = $region3
    $region8: #{tpu_custom_call.1} parent=1 // loop_exit
      _
    %2423 = vsyncpa [#allocation3], 1
    %s2424 = scalar_lea.sflag [#allocation3], 1
    %2425 = vsyncpa %s2424, 1
    %2426 = vsyncpa [#allocation5], 1
    %s2427 = scalar_lea.sflag [#allocation5], 1
    %2428 = vsyncpa %s2427, 1

</llo_original>
